<compile_context>
chip_gen: v7x
topology: tpu7x:2x2x1
jax: 0.10.0
libtpu: 0.0.40
codegen_flags: <defaults>
</compile_context>

<pallas_src>
import functools

import jax
import jax.numpy as jnp
from jax.experimental import pallas as pl
from jax.experimental.pallas import tpu as pltpu


def _round_up(n, m):
    return (n + m - 1) // m * m


def _cdiv(a, b):
    return -(-a // b)


def _vmem_limit_bytes(need_bytes):
    """Scoped-VMEM request: cover the estimated need with margin, but never
    claim the whole chip (v7x only has 64 MiB physical per TensorCore)."""
    try:
        cap = int(pltpu.get_tpu_info().vmem_capacity_bytes)
    except Exception:  # interpret mode / query unavailable: assume smallest chip
        cap = 64 * 1024 * 1024
    want = max(2 * int(need_bytes), 32 * 1024 * 1024)
    return int(min(want, int(cap * 0.8)))


def _ffn_kernel(x_ref, gamma_ref, beta_ref, w1_ref, b1_ref, w2_ref, b2_ref,
                o_ref, xn_ref, acc_ref, *, inv_d_in, residual, eps, n_sub):
    """Grid = (row tiles [parallel], hidden-dim slices [arbitrary, innermost]).

    Per row tile: LayerNorm once (kh == 0, stashed in bf16 scratch), accumulate
    both matmuls over the hidden-dim slices into an f32 scratch, finalise
    (bias + residual + store) at the last slice.
    """
    kh = pl.program_id(1)
    tm = x_ref.shape[0]
    sub = tm // n_sub

    @pl.when(kh == 0)
    def _():
        acc_ref[...] = jnp.zeros_like(acc_ref)
        # Single-pass moments (E[x^2] - mu^2) in f32. Padded feature columns of
        # x / gamma / beta are zero, so sums over the padded width equal sums
        # over the true d_in; divide by the true 1/d_in.
        for s in range(n_sub):
            rows = pl.ds(s * sub, sub)
            xb = x_ref[rows, :].astype(jnp.float32)
            s1 = jnp.sum(xb, axis=-1, keepdims=True)
            s2 = jnp.sum(xb * xb, axis=-1, keepdims=True)
            mu = s1 * inv_d_in
            var = jnp.maximum(s2 * inv_d_in - mu * mu, 0.0)
            xn = (xb - mu) * jax.lax.rsqrt(var + eps)
            xn = xn * gamma_ref[...] + beta_ref[...]
            xn_ref[rows, :] = xn.astype(xn_ref.dtype)

    # One hidden-dim slice: h = Swish(xn @ W1_k + b1_k); acc += h @ W2_k.
    # Row sub-chunks are data-independent so the scheduler can co-issue the
    # VPU/EUP work (Swish, casts) of one chunk with the MXU dots of another.
    for s in range(n_sub):
        rows = pl.ds(s * sub, sub)
        h = jnp.dot(xn_ref[rows, :], w1_ref[...],
                    preferred_element_type=jnp.float32) + b1_ref[...]
        h = h * jax.nn.sigmoid(h)                               # Swish (EUP)
        acc_ref[rows, :] += jnp.dot(h.astype(w2_ref.dtype), w2_ref[...],
                                    preferred_element_type=jnp.float32)

    @pl.when(kh == pl.num_programs(1) - 1)
    def _():
        for s in range(n_sub):
            rows = pl.ds(s * sub, sub)
            y = acc_ref[rows, :] + b2_ref[...]                  # scale folded in
            if residual:
                # Re-read the (still resident) input block instead of keeping
                # an f32 copy of x alive across both matmuls.
                y = y + x_ref[rows, :].astype(jnp.float32)
            o_ref[rows, :] = y.astype(o_ref.dtype)


def conformer_ffn(x, gamma, beta, w1, b1, w2, b2, *,
                  scale=1.0, residual=False, eps=1e-5,
                  row_tile=512, hid_tile=None, mxu_dtype=jnp.bfloat16):
    """x: (B, T, d_in) -> (B, T, d_in). Weights stored as (in, out)."""
    B, T, d_in = x.shape
    d_hid = w1.shape[1]
    N = B * T

    f32 = jnp.float32
    x_item = jnp.dtype(x.dtype).itemsize
    w_item = jnp.dtype(mxu_dtype).itemsize

    # --- row tiling: balanced tiles (minimal ragged padding), >= 2 grid steps
    #     whenever possible so both v7x TensorCores get work. ---
    row_min = 16 if x_item < 4 else 8           # sublane tile for the I/O dtype
    n_row_tiles = max(1, _cdiv(N, int(row_tile)))
    if n_row_tiles < 2 and N > row_min:
        n_row_tiles = 2                         # keep both v7x cores busy
    tm = _round_up(_cdiv(N, n_row_tiles), row_min)
    n_row_tiles = _cdiv(N, tm)
    n_p = n_row_tiles * tm

    # --- feature / hidden padding to lane-dense multiples of 128 ---
    d_in_p = _round_up(d_in, 128)
    d_hid_p = _round_up(d_hid, 128)
    if hid_tile is None:
        # Keep each weight slice <= ~8 MiB so (W1_k + W2_k + f32 h) stays well
        # inside v7x's 64 MiB VMEM without shrinking the row tile.
        ht = max(128, (8 * 1024 * 1024 // (d_in_p * w_item)) // 128 * 128)
        hid_tile = min(d_hid_p, ht)
    hid_tile = min(_round_up(int(hid_tile), 128), d_hid_p)
    n_kh = _cdiv(d_hid_p, hid_tile)
    d_hid_p = n_kh * hid_tile                   # pad hidden to a tile multiple

    # Sub-chunk only big row tiles (keeps slices sublane-aligned for bf16 too).
    n_sub = 2 if (tm >= 256 and tm % 32 == 0) else 1

    # --- host-side packing (skipped when already aligned: no extra HBM pass) ---
    x2 = x.reshape(N, d_in)
    if n_p != N or d_in_p != d_in:
        x2 = jnp.pad(x2, ((0, n_p - N), (0, d_in_p - d_in)))

    def _pad_vec(v, n):
        return jnp.pad(v.astype(f32), (0, n - v.shape[0])).reshape(1, n)

    gamma_p = _pad_vec(gamma, d_in_p)
    beta_p = _pad_vec(beta, d_in_p)
    b1_p = _pad_vec(b1, d_hid_p)
    b2_p = _pad_vec(b2.astype(f32) * scale, d_in_p)             # fold scale
    w1_p = jnp.pad(w1.astype(f32),
                   ((0, d_in_p - d_in), (0, d_hid_p - d_hid))).astype(mxu_dtype)
    w2_p = jnp.pad(w2.astype(f32) * scale,                      # fold scale
                   ((0, d_hid_p - d_hid), (0, d_in_p - d_in))).astype(mxu_dtype)

    kernel = functools.partial(_ffn_kernel, inv_d_in=1.0 / float(d_in),
                               residual=bool(residual), eps=float(eps),
                               n_sub=n_sub)

    # --- VMEM need: double-buffered activations, (single-buffered) weights,
    #     persistent scratch and live f32 intermediates. ---
    w_bufs = 1 if n_kh == 1 else 2
    need = (4 * tm * d_in_p * x_item                            # x + out tiles
            + w_bufs * (2 * d_in_p * hid_tile * w_item + hid_tile * 4)
            + 3 * d_in_p * 4                                    # gamma/beta/b2
            + tm * d_in_p * (w_item + 4)                        # xn + acc scratch
            + 2 * (tm // n_sub) * hid_tile * 4)                 # f32 h values
    vmem_limit = _vmem_limit_bytes(need)

    cost = pl.CostEstimate(
        flops=4 * n_p * d_in_p * d_hid_p,                       # two matmuls
        transcendentals=n_p * d_hid_p,                          # sigmoid
        bytes_accessed=(2 * n_p * d_in_p * x_item
                        + 2 * d_in_p * d_hid_p * w_item
                        * (1 if n_kh == 1 else n_row_tiles)
                        + (3 * d_in_p + d_hid_p) * 4))

    def _build(single_buffer_consts):
        const_kw = ({"pipeline_mode": pl.Buffered(1)}
                    if single_buffer_consts else {})
        # Weights are grid-constant only when the hidden dim is not split;
        # otherwise keep default double-buffering so the next slice prefetches.
        w_kw = const_kw if n_kh == 1 else {}
        in_specs = [
            pl.BlockSpec((tm, d_in_p), lambda i, kh: (i, 0)),               # x
            pl.BlockSpec((1, d_in_p), lambda i, kh: (0, 0), **const_kw),    # gamma
            pl.BlockSpec((1, d_in_p), lambda i, kh: (0, 0), **const_kw),    # beta
            pl.BlockSpec((d_in_p, hid_tile), lambda i, kh: (0, kh), **w_kw),  # W1
            pl.BlockSpec((1, hid_tile), lambda i, kh: (0, kh), **w_kw),       # b1
            pl.BlockSpec((hid_tile, d_in_p), lambda i, kh: (kh, 0), **w_kw),  # W2
            pl.BlockSpec((1, d_in_p), lambda i, kh: (0, 0), **const_kw),    # b2
        ]
        return pl.pallas_call(
            kernel,
            out_shape=jax.ShapeDtypeStruct((n_p, d_in_p), x.dtype),
            grid_spec=pltpu.PrefetchScalarGridSpec(
                num_scalar_prefetch=0,
                grid=(n_row_tiles, n_kh),
                in_specs=in_specs,
                out_specs=pl.BlockSpec((tm, d_in_p), lambda i, kh: (i, 0)),
                scratch_shapes=[pltpu.VMEM((tm, d_in_p), mxu_dtype),      # xn
                                pltpu.VMEM((tm, d_in_p), jnp.float32)]),  # acc
            compiler_params=pltpu.CompilerParams(
                dimension_semantics=("parallel", "arbitrary"),
                vmem_limit_bytes=vmem_limit),
            cost_estimate=cost,
        )

    args = (x2, gamma_p, beta_p, w1_p, b1_p, w2_p, b2_p)
    try:
        out = _build(True)(*args)
    except Exception:
        # Fallback if pipeline_mode=pl.Buffered(1) is rejected by this JAX
        # version: default double-buffering (costs VMEM, still correct).
        out = _build(False)(*args)

    if n_p != N or d_in_p != d_in:
        out = out[:N, :d_in]
    return out.reshape(B, T, d_in)


def _xavier_uniform(key, fan_in, fan_out, dtype=jnp.float32):
    limit = (6.0 / (fan_in + fan_out)) ** 0.5
    return jax.random.uniform(key, (fan_in, fan_out), dtype=dtype,
                              minval=-limit, maxval=limit)


if __name__ == "__main__":
    # Small shapes: batch=2, seq=8, d_in=32, d_hid=64
    B, T, d_in, d_hid = 2, 8, 32, 64

    key = jax.random.PRNGKey(0)
    kx, kw1, kw2 = jax.random.split(key, 3)

    x = jax.random.normal(kx, (B, T, d_in), dtype=jnp.float32)

    # Deterministic init (XavierLinear -> xavier-uniform W, zero bias;
    # nn.LayerNorm -> gamma=1, beta=0).
    w1 = _xavier_uniform(kw1, d_in, d_hid)   # (d_in, d_hid)
    b1 = jnp.zeros((d_hid,), jnp.float32)
    w2 = _xavier_uniform(kw2, d_hid, d_in)   # (d_hid, d_in)
    b2 = jnp.zeros((d_in,), jnp.float32)
    gamma = jnp.ones((d_in,), jnp.float32)
    beta = jnp.zeros((d_in,), jnp.float32)
    scale = 0.5

    out = conformer_ffn(x, gamma, beta, w1, b1, w2, b2,
                        scale=scale, residual=True)
    jax.block_until_ready(out)

    # Pure-JAX f32 reference (dropout is identity in eval mode).
    def ref(xx):
        mu = jnp.mean(xx, axis=-1, keepdims=True)
        var = jnp.mean((xx - mu) ** 2, axis=-1, keepdims=True)
        xn = (xx - mu) / jnp.sqrt(var + 1e-5) * gamma + beta
        h = xn @ w1 + b1
        h = h * jax.nn.sigmoid(h)
        return (h @ w2 + b2) * scale + xx

    assert out.shape == (B, T, d_in)
    # bf16 MXU operands (f32 accumulation) vs f32 reference => loosened tolerance.
    assert jnp.allclose(out, ref(x), atol=5e-2, rtol=5e-2)
    print("KERNEL_OK")
</pallas_src>

<mosaic_0001>
module attributes {stable_mosaic.version = 11 : i64} {
  func.func @_ffn_kernel(%arg0: i32, %arg1: i32, %arg2: memref<8x128xf32, #tpu.memory_space<vmem>>, %arg3: memref<1x128xf32, #tpu.memory_space<vmem>>, %arg4: memref<1x128xf32, #tpu.memory_space<vmem>>, %arg5: memref<128x128xbf16, #tpu.memory_space<vmem>>, %arg6: memref<1x128xf32, #tpu.memory_space<vmem>>, %arg7: memref<128x128xbf16, #tpu.memory_space<vmem>>, %arg8: memref<1x128xf32, #tpu.memory_space<vmem>>, %arg9: memref<8x128xf32, #tpu.memory_space<vmem>>, %arg10: memref<8x128xbf16, #tpu.memory_space<vmem>>, %arg11: memref<8x128xf32, #tpu.memory_space<vmem>>) attributes {dimension_semantics = [#tpu.dimension_semantics<parallel>, #tpu.dimension_semantics<arbitrary>], iteration_bounds = array<i64: 2, 1>, scalar_prefetch = 0 : i64, scratch_operands = 2 : i64, tpu.core_type = #tpu.core_type<tc>, window_params = [{transform_indices = @transform_0, window_bounds = array<i64: 8, 128>}, {pipeline_mode = #tpu.pipeline_mode<synchronous>, transform_indices = @transform_1, window_bounds = array<i64: 1, 128>}, {pipeline_mode = #tpu.pipeline_mode<synchronous>, transform_indices = @transform_2, window_bounds = array<i64: 1, 128>}, {pipeline_mode = #tpu.pipeline_mode<synchronous>, transform_indices = @transform_3, window_bounds = array<i64: 128, 128>}, {pipeline_mode = #tpu.pipeline_mode<synchronous>, transform_indices = @transform_4, window_bounds = array<i64: 1, 128>}, {pipeline_mode = #tpu.pipeline_mode<synchronous>, transform_indices = @transform_5, window_bounds = array<i64: 128, 128>}, {pipeline_mode = #tpu.pipeline_mode<synchronous>, transform_indices = @transform_6, window_bounds = array<i64: 1, 128>}, {transform_indices = @transform_7, window_bounds = array<i64: 8, 128>}]} {
    %c0_i32 = arith.constant 0 : i32
    %0 = arith.cmpi eq, %arg1, %c0_i32 : i32
    %1 = arith.extui %0 : i1 to i32
    %c0_i32_0 = arith.constant 0 : i32
    %2 = arith.cmpi ne, %1, %c0_i32_0 : i32
    scf.if %2 {
      %cst_16 = arith.constant 0.000000e+00 : f32
      %24 = vector.broadcast %cst_16 : f32 to vector<8x128xf32>
      %c0_17 = arith.constant 0 : index
      %c0_18 = arith.constant 0 : index
      %25 = vector.load %arg11[%c0_17, %c0_18] : memref<8x128xf32, #tpu.memory_space<vmem>>, vector<8x128xf32>
      tpu.vector_store %arg11[%c0_17, %c0_18], %24 {strides = array<i32>} : memref<8x128xf32, #tpu.memory_space<vmem>>, vector<8x128xf32>,
      %c0_19 = arith.constant 0 : index
      %c0_20 = arith.constant 0 : index
      %26 = vector.load %arg2[%c0_19, %c0_20] : memref<8x128xf32, #tpu.memory_space<vmem>>, vector<8x128xf32>
      %cst_21 = arith.constant dense<0.000000e+00> : vector<8xf32>
      %27 = vector.multi_reduction <add>, %26, %cst_21 [1] : vector<8x128xf32> to vector<8xf32>
      %28 = vector.shape_cast %27 : vector<8xf32> to vector<8x1xf32>
      %29 = arith.mulf %26, %26 : vector<8x128xf32>
      %cst_22 = arith.constant dense<0.000000e+00> : vector<8xf32>
      %30 = vector.multi_reduction <add>, %29, %cst_22 [1] : vector<8x128xf32> to vector<8xf32>
      %31 = vector.shape_cast %30 : vector<8xf32> to vector<8x1xf32>
      %cst_23 = arith.constant 3.125000e-02 : f32
      %32 = vector.broadcast %cst_23 : f32 to vector<8x1xf32>
      %33 = arith.mulf %28, %32 : vector<8x1xf32>
      %cst_24 = arith.constant 3.125000e-02 : f32
      %34 = vector.broadcast %cst_24 : f32 to vector<8x1xf32>
      %35 = arith.mulf %31, %34 : vector<8x1xf32>
      %36 = arith.mulf %33, %33 : vector<8x1xf32>
      %37 = arith.subf %35, %36 : vector<8x1xf32>
      %cst_25 = arith.constant 0.000000e+00 : f32
      %38 = vector.broadcast %cst_25 : f32 to vector<8x1xf32>
      %39 = arith.maximumf %37, %38 : vector<8x1xf32>
      %40 = vector.broadcast %33 : vector<8x1xf32> to vector<8x128xf32>
      %41 = arith.subf %26, %40 : vector<8x128xf32>
      %cst_26 = arith.constant 9.99999974E-6 : f32
      %42 = vector.broadcast %cst_26 : f32 to vector<8x1xf32>
      %43 = arith.addf %39, %42 : vector<8x1xf32>
      %44 = math.rsqrt %43 : vector<8x1xf32>
      %45 = vector.broadcast %44 : vector<8x1xf32> to vector<8x128xf32>
      %46 = arith.mulf %41, %45 : vector<8x128xf32>
      %c0_27 = arith.constant 0 : index
      %c0_28 = arith.constant 0 : index
      %47 = vector.load %arg3[%c0_27, %c0_28] : memref<1x128xf32, #tpu.memory_space<vmem>>, vector<1x128xf32>
      %48 = vector.broadcast %47 : vector<1x128xf32> to vector<8x128xf32>
      %49 = arith.mulf %46, %48 : vector<8x128xf32>
      %c0_29 = arith.constant 0 : index
      %c0_30 = arith.constant 0 : index
      %50 = vector.load %arg4[%c0_29, %c0_30] : memref<1x128xf32, #tpu.memory_space<vmem>>, vector<1x128xf32>
      %51 = vector.broadcast %50 : vector<1x128xf32> to vector<8x128xf32>
      %52 = arith.addf %49, %51 : vector<8x128xf32>
      %53 = arith.truncf %52 : vector<8x128xf32> to vector<8x128xbf16>
      %c0_31 = arith.constant 0 : index
      %c0_32 = arith.constant 0 : index
      %54 = vector.load %arg10[%c0_31, %c0_32] : memref<8x128xbf16, #tpu.memory_space<vmem>>, vector<8x128xbf16>
      tpu.vector_store %arg10[%c0_31, %c0_32], %53 {strides = array<i32>} : memref<8x128xbf16, #tpu.memory_space<vmem>>, vector<8x128xbf16>,
    } else {
    }
    %c0 = arith.constant 0 : index
    %c0_1 = arith.constant 0 : index
    %3 = vector.load %arg10[%c0, %c0_1] : memref<8x128xbf16, #tpu.memory_space<vmem>>, vector<8x128xbf16>
    %c0_2 = arith.constant 0 : index
    %c0_3 = arith.constant 0 : index
    %4 = vector.load %arg5[%c0_2, %c0_3] : memref<128x128xbf16, #tpu.memory_space<vmem>>, vector<128x128xbf16>
    %cst = arith.constant dense<0.000000e+00> : vector<8x128xf32>
    %5 = tpu.matmul %3, %4, %cst {dimension_numbers = #tpu.dot_dimension_numbers<[1], [0], [0], [1], [0, 0, 1, 1], [], []>} : vector<8x128xbf16>, vector<128x128xbf16>, vector<8x128xf32> -> vector<8x128xf32>
    %c0_4 = arith.constant 0 : index
    %c0_5 = arith.constant 0 : index
    %6 = vector.load %arg6[%c0_4, %c0_5] : memref<1x128xf32, #tpu.memory_space<vmem>>, vector<1x128xf32>
    %7 = vector.broadcast %6 : vector<1x128xf32> to vector<8x128xf32>
    %8 = arith.addf %5, %7 : vector<8x128xf32>
    %9 = arith.negf %8 : vector<8x128xf32>
    %10 = math.exp %9 : vector<8x128xf32>
    %cst_6 = arith.constant 1.000000e+00 : f32
    %11 = vector.broadcast %cst_6 : f32 to vector<8x128xf32>
    %12 = arith.addf %11, %10 : vector<8x128xf32>
    %13 = arith.divf %11, %12 : vector<8x128xf32>
    %14 = arith.mulf %8, %13 : vector<8x128xf32>
    %c0_7 = arith.constant 0 : index
    %c0_8 = arith.constant 0 : index
    %15 = vector.load %arg11[%c0_7, %c0_8] : memref<8x128xf32, #tpu.memory_space<vmem>>, vector<8x128xf32>
    %16 = arith.truncf %14 : vector<8x128xf32> to vector<8x128xbf16>
    %c0_9 = arith.constant 0 : index
    %c0_10 = arith.constant 0 : index
    %17 = vector.load %arg7[%c0_9, %c0_10] : memref<128x128xbf16, #tpu.memory_space<vmem>>, vector<128x128xbf16>
    %cst_11 = arith.constant dense<0.000000e+00> : vector<8x128xf32>
    %18 = tpu.matmul %16, %17, %cst_11 {dimension_numbers = #tpu.dot_dimension_numbers<[1], [0], [0], [1], [0, 0, 1, 1], [], []>} : vector<8x128xbf16>, vector<128x128xbf16>, vector<8x128xf32> -> vector<8x128xf32>
    %19 = arith.addf %15, %18 : vector<8x128xf32>
    %c0_12 = arith.constant 0 : index
    %c0_13 = arith.constant 0 : index
    %20 = vector.load %arg11[%c0_12, %c0_13] : memref<8x128xf32, #tpu.memory_space<vmem>>, vector<8x128xf32>
    tpu.vector_store %arg11[%c0_12, %c0_13], %19 {strides = array<i32>} : memref<8x128xf32, #tpu.memory_space<vmem>>, vector<8x128xf32>,
    %c0_i32_14 = arith.constant 0 : i32
    %21 = arith.cmpi eq, %arg1, %c0_i32_14 : i32
    %22 = arith.extui %21 : i1 to i32
    %c0_i32_15 = arith.constant 0 : i32
    %23 = arith.cmpi ne, %22, %c0_i32_15 : i32
    scf.if %23 {
      %c0_16 = arith.constant 0 : index
      %c0_17 = arith.constant 0 : index
      %24 = vector.load %arg11[%c0_16, %c0_17] : memref<8x128xf32, #tpu.memory_space<vmem>>, vector<8x128xf32>
      %c0_18 = arith.constant 0 : index
      %c0_19 = arith.constant 0 : index
      %25 = vector.load %arg8[%c0_18, %c0_19] : memref<1x128xf32, #tpu.memory_space<vmem>>, vector<1x128xf32>
      %26 = vector.broadcast %25 : vector<1x128xf32> to vector<8x128xf32>
      %27 = arith.addf %24, %26 : vector<8x128xf32>
      %c0_20 = arith.constant 0 : index
      %c0_21 = arith.constant 0 : index
      %28 = vector.load %arg2[%c0_20, %c0_21] : memref<8x128xf32, #tpu.memory_space<vmem>>, vector<8x128xf32>
      %29 = arith.addf %27, %28 : vector<8x128xf32>
      %c0_22 = arith.constant 0 : index
      %c0_23 = arith.constant 0 : index
      %30 = vector.load %arg9[%c0_22, %c0_23] : memref<8x128xf32, #tpu.memory_space<vmem>>, vector<8x128xf32>
      tpu.vector_store %arg9[%c0_22, %c0_23], %29 {strides = array<i32>} : memref<8x128xf32, #tpu.memory_space<vmem>>, vector<8x128xf32>,
    } else {
    }
    return
  }
  func.func @transform_0(%arg0: i32, %arg1: i32) -> (i32, i32) {
    %c0_i32 = arith.constant 0 : i32
    %c0_i32_0 = arith.constant 0 : i32
    return %arg0, %c0_i32 : i32, i32
  }
  func.func @transform_1(%arg0: i32, %arg1: i32) -> (i32, i32) {
    %c0_i32 = arith.constant 0 : i32
    %c0_i32_0 = arith.constant 0 : i32
    %c0_i32_1 = arith.constant 0 : i32
    return %c0_i32, %c0_i32_0 : i32, i32
  }
  func.func @transform_2(%arg0: i32, %arg1: i32) -> (i32, i32) {
    %c0_i32 = arith.constant 0 : i32
    %c0_i32_0 = arith.constant 0 : i32
    %c0_i32_1 = arith.constant 0 : i32
    return %c0_i32, %c0_i32_0 : i32, i32
  }
  func.func @transform_3(%arg0: i32, %arg1: i32) -> (i32, i32) {
    %c0_i32 = arith.constant 0 : i32
    %c0_i32_0 = arith.constant 0 : i32
    return %c0_i32, %arg1 : i32, i32
  }
  func.func @transform_4(%arg0: i32, %arg1: i32) -> (i32, i32) {
    %c0_i32 = arith.constant 0 : i32
    %c0_i32_0 = arith.constant 0 : i32
    return %c0_i32, %arg1 : i32, i32
  }
  func.func @transform_5(%arg0: i32, %arg1: i32) -> (i32, i32) {
    %c0_i32 = arith.constant 0 : i32
    %c0_i32_0 = arith.constant 0 : i32
    return %arg1, %c0_i32 : i32, i32
  }
  func.func @transform_6(%arg0: i32, %arg1: i32) -> (i32, i32) {
    %c0_i32 = arith.constant 0 : i32
    %c0_i32_0 = arith.constant 0 : i32
    %c0_i32_1 = arith.constant 0 : i32
    return %c0_i32, %c0_i32_0 : i32, i32
  }
  func.func @transform_7(%arg0: i32, %arg1: i32) -> (i32, i32) {
    %c0_i32 = arith.constant 0 : i32
    %c0_i32_0 = arith.constant 0 : i32
    return %arg0, %c0_i32 : i32, i32
  }
}

module attributes {stable_mosaic.version = 11 : i64} {
  func.func @_ffn_kernel(%arg0: i32, %arg1: i32, %arg2: memref<8x128xf32, #tpu.memory_space<vmem>>, %arg3: memref<1x128xf32, #tpu.memory_space<vmem>>, %arg4: memref<1x128xf32, #tpu.memory_space<vmem>>, %arg5: memref<128x128xbf16, #tpu.memory_space<vmem>>, %arg6: memref<1x128xf32, #tpu.memory_space<vmem>>, %arg7: memref<128x128xbf16, #tpu.memory_space<vmem>>, %arg8: memref<1x128xf32, #tpu.memory_space<vmem>>, %arg9: memref<8x128xf32, #tpu.memory_space<vmem>>, %arg10: memref<8x128xbf16, #tpu.memory_space<vmem>>, %arg11: memref<8x128xf32, #tpu.memory_space<vmem>>) attributes {dimension_semantics = [#tpu.dimension_semantics<parallel>, #tpu.dimension_semantics<arbitrary>], iteration_bounds = array<i64: 2, 1>, scalar_prefetch = 0 : i64, scratch_operands = 2 : i64, tpu.core_type = #tpu.core_type<tc>, window_params = [{transform_indices = @transform_0, window_bounds = array<i64: 8, 128>}, {pipeline_mode = #tpu.pipeline_mode<synchronous>, transform_indices = @transform_1, window_bounds = array<i64: 1, 128>}, {pipeline_mode = #tpu.pipeline_mode<synchronous>, transform_indices = @transform_2, window_bounds = array<i64: 1, 128>}, {transform_indices = @transform_3, window_bounds = array<i64: 128, 128>}, {transform_indices = @transform_4, window_bounds = array<i64: 1, 128>}, {transform_indices = @transform_5, window_bounds = array<i64: 128, 128>}, {pipeline_mode = #tpu.pipeline_mode<synchronous>, transform_indices = @transform_6, window_bounds = array<i64: 1, 128>}, {transform_indices = @transform_7, window_bounds = array<i64: 8, 128>}]} {
    %c0_i32 = arith.constant 0 : i32
    %0 = arith.cmpi eq, %arg1, %c0_i32 : i32
    %1 = arith.extui %0 : i1 to i32
    %c0_i32_0 = arith.constant 0 : i32
    %2 = arith.cmpi ne, %1, %c0_i32_0 : i32
    scf.if %2 {
      %cst_16 = arith.constant 0.000000e+00 : f32
      %24 = vector.broadcast %cst_16 : f32 to vector<8x128xf32>
      %c0_17 = arith.constant 0 : index
      %c0_18 = arith.constant 0 : index
      %25 = vector.load %arg11[%c0_17, %c0_18] : memref<8x128xf32, #tpu.memory_space<vmem>>, vector<8x128xf32>
      tpu.vector_store %arg11[%c0_17, %c0_18], %24 {strides = array<i32>} : memref<8x128xf32, #tpu.memory_space<vmem>>, vector<8x128xf32>,
      %c0_19 = arith.constant 0 : index
      %c0_20 = arith.constant 0 : index
      %26 = vector.load %arg2[%c0_19, %c0_20] : memref<8x128xf32, #tpu.memory_space<vmem>>, vector<8x128xf32>
      %cst_21 = arith.constant dense<0.000000e+00> : vector<8xf32>
      %27 = vector.multi_reduction <add>, %26, %cst_21 [1] : vector<8x128xf32> to vector<8xf32>
      %28 = vector.shape_cast %27 : vector<8xf32> to vector<8x1xf32>
      %29 = arith.mulf %26, %26 : vector<8x128xf32>
      %cst_22 = arith.constant dense<0.000000e+00> : vector<8xf32>
      %30 = vector.multi_reduction <add>, %29, %cst_22 [1] : vector<8x128xf32> to vector<8xf32>
      %31 = vector.shape_cast %30 : vector<8xf32> to vector<8x1xf32>
      %cst_23 = arith.constant 3.125000e-02 : f32
      %32 = vector.broadcast %cst_23 : f32 to vector<8x1xf32>
      %33 = arith.mulf %28, %32 : vector<8x1xf32>
      %cst_24 = arith.constant 3.125000e-02 : f32
      %34 = vector.broadcast %cst_24 : f32 to vector<8x1xf32>
      %35 = arith.mulf %31, %34 : vector<8x1xf32>
      %36 = arith.mulf %33, %33 : vector<8x1xf32>
      %37 = arith.subf %35, %36 : vector<8x1xf32>
      %cst_25 = arith.constant 0.000000e+00 : f32
      %38 = vector.broadcast %cst_25 : f32 to vector<8x1xf32>
      %39 = arith.maximumf %37, %38 : vector<8x1xf32>
      %40 = vector.broadcast %33 : vector<8x1xf32> to vector<8x128xf32>
      %41 = arith.subf %26, %40 : vector<8x128xf32>
      %cst_26 = arith.constant 9.99999974E-6 : f32
      %42 = vector.broadcast %cst_26 : f32 to vector<8x1xf32>
      %43 = arith.addf %39, %42 : vector<8x1xf32>
      %44 = math.rsqrt %43 : vector<8x1xf32>
      %45 = vector.broadcast %44 : vector<8x1xf32> to vector<8x128xf32>
      %46 = arith.mulf %41, %45 : vector<8x128xf32>
      %c0_27 = arith.constant 0 : index
      %c0_28 = arith.constant 0 : index
      %47 = vector.load %arg3[%c0_27, %c0_28] : memref<1x128xf32, #tpu.memory_space<vmem>>, vector<1x128xf32>
      %48 = vector.broadcast %47 : vector<1x128xf32> to vector<8x128xf32>
      %49 = arith.mulf %46, %48 : vector<8x128xf32>
      %c0_29 = arith.constant 0 : index
      %c0_30 = arith.constant 0 : index
      %50 = vector.load %arg4[%c0_29, %c0_30] : memref<1x128xf32, #tpu.memory_space<vmem>>, vector<1x128xf32>
      %51 = vector.broadcast %50 : vector<1x128xf32> to vector<8x128xf32>
      %52 = arith.addf %49, %51 : vector<8x128xf32>
      %53 = arith.truncf %52 : vector<8x128xf32> to vector<8x128xbf16>
      %c0_31 = arith.constant 0 : index
      %c0_32 = arith.constant 0 : index
      %54 = vector.load %arg10[%c0_31, %c0_32] : memref<8x128xbf16, #tpu.memory_space<vmem>>, vector<8x128xbf16>
      tpu.vector_store %arg10[%c0_31, %c0_32], %53 {strides = array<i32>} : memref<8x128xbf16, #tpu.memory_space<vmem>>, vector<8x128xbf16>,
    } else {
    }
    %c0 = arith.constant 0 : index
    %c0_1 = arith.constant 0 : index
    %3 = vector.load %arg10[%c0, %c0_1] : memref<8x128xbf16, #tpu.memory_space<vmem>>, vector<8x128xbf16>
    %c0_2 = arith.constant 0 : index
    %c0_3 = arith.constant 0 : index
    %4 = vector.load %arg5[%c0_2, %c0_3] : memref<128x128xbf16, #tpu.memory_space<vmem>>, vector<128x128xbf16>
    %cst = arith.constant dense<0.000000e+00> : vector<8x128xf32>
    %5 = tpu.matmul %3, %4, %cst {dimension_numbers = #tpu.dot_dimension_numbers<[1], [0], [0], [1], [0, 0, 1, 1], [], []>} : vector<8x128xbf16>, vector<128x128xbf16>, vector<8x128xf32> -> vector<8x128xf32>
    %c0_4 = arith.constant 0 : index
    %c0_5 = arith.constant 0 : index
    %6 = vector.load %arg6[%c0_4, %c0_5] : memref<1x128xf32, #tpu.memory_space<vmem>>, vector<1x128xf32>
    %7 = vector.broadcast %6 : vector<1x128xf32> to vector<8x128xf32>
    %8 = arith.addf %5, %7 : vector<8x128xf32>
    %9 = arith.negf %8 : vector<8x128xf32>
    %10 = math.exp %9 : vector<8x128xf32>
    %cst_6 = arith.constant 1.000000e+00 : f32
    %11 = vector.broadcast %cst_6 : f32 to vector<8x128xf32>
    %12 = arith.addf %11, %10 : vector<8x128xf32>
    %13 = arith.divf %11, %12 : vector<8x128xf32>
    %14 = arith.mulf %8, %13 : vector<8x128xf32>
    %c0_7 = arith.constant 0 : index
    %c0_8 = arith.constant 0 : index
    %15 = vector.load %arg11[%c0_7, %c0_8] : memref<8x128xf32, #tpu.memory_space<vmem>>, vector<8x128xf32>
    %16 = arith.truncf %14 : vector<8x128xf32> to vector<8x128xbf16>
    %c0_9 = arith.constant 0 : index
    %c0_10 = arith.constant 0 : index
    %17 = vector.load %arg7[%c0_9, %c0_10] : memref<128x128xbf16, #tpu.memory_space<vmem>>, vector<128x128xbf16>
    %cst_11 = arith.constant dense<0.000000e+00> : vector<8x128xf32>
    %18 = tpu.matmul %16, %17, %cst_11 {dimension_numbers = #tpu.dot_dimension_numbers<[1], [0], [0], [1], [0, 0, 1, 1], [], []>} : vector<8x128xbf16>, vector<128x128xbf16>, vector<8x128xf32> -> vector<8x128xf32>
    %19 = arith.addf %15, %18 : vector<8x128xf32>
    %c0_12 = arith.constant 0 : index
    %c0_13 = arith.constant 0 : index
    %20 = vector.load %arg11[%c0_12, %c0_13] : memref<8x128xf32, #tpu.memory_space<vmem>>, vector<8x128xf32>
    tpu.vector_store %arg11[%c0_12, %c0_13], %19 {strides = array<i32>} : memref<8x128xf32, #tpu.memory_space<vmem>>, vector<8x128xf32>,
    %c0_i32_14 = arith.constant 0 : i32
    %21 = arith.cmpi eq, %arg1, %c0_i32_14 : i32
    %22 = arith.extui %21 : i1 to i32
    %c0_i32_15 = arith.constant 0 : i32
    %23 = arith.cmpi ne, %22, %c0_i32_15 : i32
    scf.if %23 {
      %c0_16 = arith.constant 0 : index
      %c0_17 = arith.constant 0 : index
      %24 = vector.load %arg11[%c0_16, %c0_17] : memref<8x128xf32, #tpu.memory_space<vmem>>, vector<8x128xf32>
      %c0_18 = arith.constant 0 : index
      %c0_19 = arith.constant 0 : index
      %25 = vector.load %arg8[%c0_18, %c0_19] : memref<1x128xf32, #tpu.memory_space<vmem>>, vector<1x128xf32>
      %26 = vector.broadcast %25 : vector<1x128xf32> to vector<8x128xf32>
      %27 = arith.addf %24, %26 : vector<8x128xf32>
      %c0_20 = arith.constant 0 : index
      %c0_21 = arith.constant 0 : index
      %28 = vector.load %arg2[%c0_20, %c0_21] : memref<8x128xf32, #tpu.memory_space<vmem>>, vector<8x128xf32>
      %29 = arith.addf %27, %28 : vector<8x128xf32>
      %c0_22 = arith.constant 0 : index
      %c0_23 = arith.constant 0 : index
      %30 = vector.load %arg9[%c0_22, %c0_23] : memref<8x128xf32, #tpu.memory_space<vmem>>, vector<8x128xf32>
      tpu.vector_store %arg9[%c0_22, %c0_23], %29 {strides = array<i32>} : memref<8x128xf32, #tpu.memory_space<vmem>>, vector<8x128xf32>,
    } else {
    }
    return
  }
  func.func @transform_0(%arg0: i32, %arg1: i32) -> (i32, i32) {
    %c0_i32 = arith.constant 0 : i32
    %c0_i32_0 = arith.constant 0 : i32
    return %arg0, %c0_i32 : i32, i32
  }
  func.func @transform_1(%arg0: i32, %arg1: i32) -> (i32, i32) {
    %c0_i32 = arith.constant 0 : i32
    %c0_i32_0 = arith.constant 0 : i32
    %c0_i32_1 = arith.constant 0 : i32
    return %c0_i32, %c0_i32_0 : i32, i32
  }
  func.func @transform_2(%arg0: i32, %arg1: i32) -> (i32, i32) {
    %c0_i32 = arith.constant 0 : i32
    %c0_i32_0 = arith.constant 0 : i32
    %c0_i32_1 = arith.constant 0 : i32
    return %c0_i32, %c0_i32_0 : i32, i32
  }
  func.func @transform_3(%arg0: i32, %arg1: i32) -> (i32, i32) {
    %c0_i32 = arith.constant 0 : i32
    %c0_i32_0 = arith.constant 0 : i32
    return %c0_i32, %arg1 : i32, i32
  }
  func.func @transform_4(%arg0: i32, %arg1: i32) -> (i32, i32) {
    %c0_i32 = arith.constant 0 : i32
    %c0_i32_0 = arith.constant 0 : i32
    return %c0_i32, %arg1 : i32, i32
  }
  func.func @transform_5(%arg0: i32, %arg1: i32) -> (i32, i32) {
    %c0_i32 = arith.constant 0 : i32
    %c0_i32_0 = arith.constant 0 : i32
    return %arg1, %c0_i32 : i32, i32
  }
  func.func @transform_6(%arg0: i32, %arg1: i32) -> (i32, i32) {
    %c0_i32 = arith.constant 0 : i32
    %c0_i32_0 = arith.constant 0 : i32
    %c0_i32_1 = arith.constant 0 : i32
    return %c0_i32, %c0_i32_0 : i32, i32
  }
  func.func @transform_7(%arg0: i32, %arg1: i32) -> (i32, i32) {
    %c0_i32 = arith.constant 0 : i32
    %c0_i32_0 = arith.constant 0 : i32
    return %arg0, %c0_i32 : i32, i32
  }
}

</mosaic_0001>

<llo_original>
// kernel: tpu_custom_call.1
$region0: #{tpu_custom_call.1}
  #allocation0 [shape = 'u32[]', space=smem, size = 0x4, offset = 0x4, fixed_abs, tag = 'smem constant byte address 0x4 - core index']
  #allocation1 [shape = 'u32[144,128]{1,0:T(1,128)}', space=vmem, size = 0x12000, scoped, tag = 'internal scratch']
  #allocation2 [shape = 'bf16[8,128]{1,0:T(8,128)(2,1)}', space=vmem, size = 0x800, scoped, tag = 'scratch operand']
  #allocation3 [shape = 'f32[8,128]{1,0:T(8,128)}', space=vmem, size = 0x1000, scoped, tag = 'scratch operand']
  %s0 = inlined_call_operand.hbm [shape: f32[16,128], index: 0, kind: input, shape index: {}]
  %s1 = inlined_call_operand.vmem [shape: f32[1,128], index: 1, kind: input, shape index: {}]
  %s2 = inlined_call_operand.vmem [shape: f32[1,128], index: 2, kind: input, shape index: {}]
  %s3 = inlined_call_operand.hbm [shape: bf16[128,128], index: 3, kind: input, shape index: {}]
  %s4 = inlined_call_operand.vmem [shape: f32[1,128], index: 4, kind: input, shape index: {}]
  %s5 = inlined_call_operand.hbm [shape: bf16[128,128], index: 5, kind: input, shape index: {}]
  %s6 = inlined_call_operand.vmem [shape: f32[1,128], index: 6, kind: input, shape index: {}]
  %s7 = inlined_call_operand.hbm [shape: f32[16,128], index: 7, kind: output, shape index: {}]
  %s8 = sld [smem:[#allocation0]]
  $region81: #{tpu_custom_call.1} parent=0
    _
  %s10 = ssub.s32 1, %s8
  %s11 = scalar_select 0, %s10, %s8
  $region1: #{tpu_custom_call.1} parent=0
    #allocation4 [shape = 'u8[8192]{0}', space=vmem, size = 0x2000, scoped, tag = 'input window, operand 0']
    #allocation5 [shape = 's32[2]{0}', space=sflag, size = 0x8, scoped, tag = 'scoped memory for tpu_custom_call.1']
    #allocation6 [shape = 's32[2]{0}', space=sflag, size = 0x8, scoped, tag = 'scoped memory for tpu_custom_call.1']
    #allocation7 [shape = 'u8[32768]{0}', space=vmem, size = 0x8000, scoped, tag = 'input window, operand 3, single buffered']
    #allocation8 [shape = 's32[1]{0}', space=sflag, size = 0x4, scoped, tag = 'scoped memory for tpu_custom_call.1']
    #allocation9 [shape = 'u8[32768]{0}', space=vmem, size = 0x8000, scoped, tag = 'input window, operand 5, single buffered']
    #allocation10 [shape = 'u8[8192]{0}', space=vmem, size = 0x2000, scoped, tag = 'output window, operand 0']
    %12 = vsyncpa [#allocation5], 0
    %s13 = scalar_lea.sflag [#allocation5], 1
    %14 = vsyncpa %s13, 0
    %15 = vsyncpa [#allocation8], 0
    %16 = vsyncpa [#allocation6], 0
    %s17 = scalar_lea.sflag [#allocation6], 1
    %18 = vsyncpa %s17, 0
    loop: start=0, step=1, limit=4
    $region2: #{tpu_custom_call.1} parent=1 // loop_pre_header
      _
    $region3: #{tpu_custom_call.1} parent=1 // loop_header
      %s20 = sphi 0, %s24
      %p21 = scmp.ge.s32.totalorder %s20, 4
      %s27 = sphi 0, %s39
      %s28 = sphi 0, %s35
      %s29 = sphi 0, %s27
      %s30 = sphi 0, %s28
      %s31 = sphi 0, %s29
      %s32 = sphi 0, %s30
      %s42 = sphi 0, %s44
      %s45 = sphi 0, %s42
      %s46 = sphi 0, %s45
      %s62 = sphi 0, %s46
      %s66 = sphi 0, %s66
      %s68 = sphi 0, %s66
      %s69 = sphi 0, %s68
      %s83 = sphi 0, %s69
      %s87 = sphi 0, %s87
      %s89 = sphi 0, %s87
      %s90 = sphi 0, %s89
      %s104 = sphi 0, %s90
      %s110 = sphi 0, %s112
      %s113 = sphi 0, %s110
      %s114 = sphi 0, %s113
      %s130 = sphi 0, %s114
      %s136 = sphi 0, %s138
      %s139 = sphi 0, %s136
      %s140 = sphi 0, %s139
      %s156 = sphi 0, %s140
      %s162 = sphi 0, %s164
      %s165 = sphi 0, %s162
      %s166 = sphi 0, %s165
      %s182 = sphi 0, %s166
      %s186 = sphi 0, %s186
      %s188 = sphi 0, %s186
      %s189 = sphi 0, %s188
      %s203 = sphi 0, %s189
      %s209 = sphi 0, %s211
      %s212 = sphi 0, %s209
      %s213 = sphi 0, %s212
      %s229 = sphi 0, %s213
    $region4: #{tpu_custom_call.1} parent=1 // loop_header_branch
      %23 = sbr.rel (%p21) target = $region8
    $region5: #{tpu_custom_call.1} parent=1 // loop_body
      %s25 = ssub.s32 %s20, 1
      %s26 = ssub.s32 %s20, 2
      %s33 = sadd.s32 1, %s28
      %p34 = scmp.ge.s32.totalorder %s33, 1
      %s35 = scalar_select %p34, 0, %s33
      %s36 = sadd.s32 1, %s27
      %s37 = scalar_select %p34, %s36, %s27
      %p38 = scmp.ge.s32.totalorder %s37, 2
      %s39 = scalar_select %p38, 0, %s37
      %s40 = ssub.s32 %s27, %s39
      %p41 = scmp.eq.s32.totalorder %s40, 0
      %s43 = sadd.s32 %s42, 1
      %s44 = scalar_select %p41, %s42, %s43
      %p47 = pneg %p41
      %p48 = scmp.eq.s32.totalorder %s20, 1
      %p49 = por %p47, %p48
      %p50 = scmp.ne.s32.totalorder %s42, %s45
      %p51 = scmp.eq.s32.totalorder %s20, 0
      %p52 = por %p50, %p51
      %p53 = scmp.ne.s32.totalorder %s42, %s45
      %p54 = scmp.eq.s32.totalorder %s25, 1
      %p55 = por %p53, %p54
      %p56 = scmp.ne.s32.totalorder %s45, %s46
      %p57 = scmp.eq.s32.totalorder %s25, 0
      %p58 = por %p56, %p57
      %p59 = scmp.ne.s32.totalorder %s45, %s46
      %p60 = scmp.eq.s32.totalorder %s26, 1
      %p61 = por %p59, %p60
      %p63 = scmp.ne.s32.totalorder %s46, %s62
      %p64 = scmp.eq.s32.totalorder %s26, 0
      %p65 = por %p63, %p64
      %s67 = sadd.s32 %s66, 1
      %p70 = scmp.eq.s32.totalorder %s20, 1
      %p71 = scmp.ne.s32.totalorder %s66, %s68
      %p72 = scmp.eq.s32.totalorder %s20, 0
      %p73 = por %p71, %p72
      %p74 = scmp.ne.s32.totalorder %s66, %s68
      %p75 = scmp.eq.s32.totalorder %s25, 1
      %p76 = por %p74, %p75
      %p77 = scmp.ne.s32.totalorder %s68, %s69
      %p78 = scmp.eq.s32.totalorder %s25, 0
      %p79 = por %p77, %p78
      %p80 = scmp.ne.s32.totalorder %s68, %s69
      %p81 = scmp.eq.s32.totalorder %s26, 1
      %p82 = por %p80, %p81
      %p84 = scmp.ne.s32.totalorder %s69, %s83
      %p85 = scmp.eq.s32.totalorder %s26, 0
      %p86 = por %p84, %p85
      %s88 = sadd.s32 %s87, 1
      %p91 = scmp.eq.s32.totalorder %s20, 1
      %p92 = scmp.ne.s32.totalorder %s87, %s89
      %p93 = scmp.eq.s32.totalorder %s20, 0
      %p94 = por %p92, %p93
      %p95 = scmp.ne.s32.totalorder %s87, %s89
      %p96 = scmp.eq.s32.totalorder %s25, 1
      %p97 = por %p95, %p96
      %p98 = scmp.ne.s32.totalorder %s89, %s90
      %p99 = scmp.eq.s32.totalorder %s25, 0
      %p100 = por %p98, %p99
      %p101 = scmp.ne.s32.totalorder %s89, %s90
      %p102 = scmp.eq.s32.totalorder %s26, 1
      %p103 = por %p101, %p102
      %p105 = scmp.ne.s32.totalorder %s90, %s104
      %p106 = scmp.eq.s32.totalorder %s26, 0
      %p107 = por %p105, %p106
      %s108 = ssub.s32 %s28, %s35
      %p109 = scmp.eq.s32.totalorder %s108, 0
      %s111 = sadd.s32 %s110, 1
      %s112 = scalar_select %p109, %s110, %s111
      %p115 = pneg %p109
      %p116 = scmp.eq.s32.totalorder %s20, 1
      %p117 = por %p115, %p116
      %p118 = scmp.ne.s32.totalorder %s110, %s113
      %p119 = scmp.eq.s32.totalorder %s20, 0
      %p120 = por %p118, %p119
      %p121 = scmp.ne.s32.totalorder %s110, %s113
      %p122 = scmp.eq.s32.totalorder %s25, 1
      %p123 = por %p121, %p122
      %p124 = scmp.ne.s32.totalorder %s113, %s114
      %p125 = scmp.eq.s32.totalorder %s25, 0
      %p126 = por %p124, %p125
      %p127 = scmp.ne.s32.totalorder %s113, %s114
      %p128 = scmp.eq.s32.totalorder %s26, 1
      %p129 = por %p127, %p128
      %p131 = scmp.ne.s32.totalorder %s114, %s130
      %p132 = scmp.eq.s32.totalorder %s26, 0
      %p133 = por %p131, %p132
      %s134 = ssub.s32 %s28, %s35
      %p135 = scmp.eq.s32.totalorder %s134, 0
      %s137 = sadd.s32 %s136, 1
      %s138 = scalar_select %p135, %s136, %s137
      %p141 = pneg %p135
      %p142 = scmp.eq.s32.totalorder %s20, 1
      %p143 = por %p141, %p142
      %p144 = scmp.ne.s32.totalorder %s136, %s139
      %p145 = scmp.eq.s32.totalorder %s20, 0
      %p146 = por %p144, %p145
      %p147 = scmp.ne.s32.totalorder %s136, %s139
      %p148 = scmp.eq.s32.totalorder %s25, 1
      %p149 = por %p147, %p148
      %p150 = scmp.ne.s32.totalorder %s139, %s140
      %p151 = scmp.eq.s32.totalorder %s25, 0
      %p152 = por %p150, %p151
      %p153 = scmp.ne.s32.totalorder %s139, %s140
      %p154 = scmp.eq.s32.totalorder %s26, 1
      %p155 = por %p153, %p154
      %p157 = scmp.ne.s32.totalorder %s140, %s156
      %p158 = scmp.eq.s32.totalorder %s26, 0
      %p159 = por %p157, %p158
      %s160 = ssub.s32 %s28, %s35
      %p161 = scmp.eq.s32.totalorder %s160, 0
      %s163 = sadd.s32 %s162, 1
      %s164 = scalar_select %p161, %s162, %s163
      %p167 = pneg %p161
      %p168 = scmp.eq.s32.totalorder %s20, 1
      %p169 = por %p167, %p168
      %p170 = scmp.ne.s32.totalorder %s162, %s165
      %p171 = scmp.eq.s32.totalorder %s20, 0
      %p172 = por %p170, %p171
      %p173 = scmp.ne.s32.totalorder %s162, %s165
      %p174 = scmp.eq.s32.totalorder %s25, 1
      %p175 = por %p173, %p174
      %p176 = scmp.ne.s32.totalorder %s165, %s166
      %p177 = scmp.eq.s32.totalorder %s25, 0
      %p178 = por %p176, %p177
      %p179 = scmp.ne.s32.totalorder %s165, %s166
      %p180 = scmp.eq.s32.totalorder %s26, 1
      %p181 = por %p179, %p180
      %p183 = scmp.ne.s32.totalorder %s166, %s182
      %p184 = scmp.eq.s32.totalorder %s26, 0
      %p185 = por %p183, %p184
      %s187 = sadd.s32 %s186, 1
      %p190 = scmp.eq.s32.totalorder %s20, 1
      %p191 = scmp.ne.s32.totalorder %s186, %s188
      %p192 = scmp.eq.s32.totalorder %s20, 0
      %p193 = por %p191, %p192
      %p194 = scmp.ne.s32.totalorder %s186, %s188
      %p195 = scmp.eq.s32.totalorder %s25, 1
      %p196 = por %p194, %p195
      %p197 = scmp.ne.s32.totalorder %s188, %s189
      %p198 = scmp.eq.s32.totalorder %s25, 0
      %p199 = por %p197, %p198
      %p200 = scmp.ne.s32.totalorder %s188, %s189
      %p201 = scmp.eq.s32.totalorder %s26, 1
      %p202 = por %p200, %p201
      %p204 = scmp.ne.s32.totalorder %s189, %s203
      %p205 = scmp.eq.s32.totalorder %s26, 0
      %p206 = por %p204, %p205
      %s207 = ssub.s32 %s27, %s39
      %p208 = scmp.eq.s32.totalorder %s207, 0
      %s210 = sadd.s32 %s209, 1
      %s211 = scalar_select %p208, %s209, %s210
      %p214 = pneg %p208
      %p215 = scmp.eq.s32.totalorder %s20, 1
      %p216 = por %p214, %p215
      %p217 = scmp.ne.s32.totalorder %s209, %s212
      %p218 = scmp.eq.s32.totalorder %s20, 0
      %p219 = por %p217, %p218
      %p220 = scmp.ne.s32.totalorder %s209, %s212
      %p221 = scmp.eq.s32.totalorder %s25, 1
      %p222 = por %p220, %p221
      %p223 = scmp.ne.s32.totalorder %s212, %s213
      %p224 = scmp.eq.s32.totalorder %s25, 0
      %p225 = por %p223, %p224
      %p226 = scmp.ne.s32.totalorder %s212, %s213
      %p227 = scmp.eq.s32.totalorder %s26, 1
      %p228 = por %p226, %p227
      %p230 = scmp.ne.s32.totalorder %s213, %s229
      %p231 = scmp.eq.s32.totalorder %s26, 0
      %p232 = por %p230, %p231
      %p233 = scmp.le.s32.totalorder 1, %s20
      %p234 = scmp.lt.s32.totalorder %s20, 3
      %p235 = pnand %p233, %p234
      %p236 = pneg %p235
      // Predicated region
      $region9: #{tpu_custom_call.1} parent=5 // pred_check
        _
      $region10: #{tpu_custom_call.1} parent=5 // pred_check_branch
        %238 = sbr.rel (%p235) target = $region12
      $region11: #{tpu_custom_call.1} parent=5 // pred_region
        %s239 = ssub.s32 %s20, 1
        // Predicated region
        $region13: #{tpu_custom_call.1} parent=11 // pred_check
          %p240 = pneg %p79
        $region14: #{tpu_custom_call.1} parent=11 // pred_check_branch
          %242 = sbr.rel (%p240) target = $region16
        $region15: #{tpu_custom_call.1} parent=11 // pred_region
          _
        $region16: #{tpu_custom_call.1} parent=11 // pred_fallthru
          _
        // Predicated region
        $region17: #{tpu_custom_call.1} parent=11 // pred_check
          %p243 = pneg %p100
        $region18: #{tpu_custom_call.1} parent=11 // pred_check_branch
          %245 = sbr.rel (%p243) target = $region20
        $region19: #{tpu_custom_call.1} parent=11 // pred_region
          _
        $region20: #{tpu_custom_call.1} parent=11 // pred_fallthru
          _
        // Predicated region
        $region21: #{tpu_custom_call.1} parent=11 // pred_check
          %p246 = pneg %p126
        $region22: #{tpu_custom_call.1} parent=11 // pred_check_branch
          %248 = sbr.rel (%p246) target = $region24
        $region23: #{tpu_custom_call.1} parent=11 // pred_region
          %s250 = ssub.s32 1024, 1024
          %251 = vsyncadd [#allocation8], %s250
          %s252 = smul.addr %s30, 64
          %s253 = scalar_lea.hbm %s3, %s252
          %s254 = sshll.u32 [#allocation7], 4
          %s255 = int_to_ptr.vmem [resolvable:$true] %s254
          %260 = dma.hbm_to_vmem [thread:$0]  %s253, 1024, %s255, [#allocation8], 64, 64, 4
        $region24: #{tpu_custom_call.1} parent=11 // pred_fallthru
          _
        // Predicated region
        $region25: #{tpu_custom_call.1} parent=11 // pred_check
          %p261 = pneg %p152
        $region26: #{tpu_custom_call.1} parent=11 // pred_check_branch
          %263 = sbr.rel (%p261) target = $region28
        $region27: #{tpu_custom_call.1} parent=11 // pred_region
          %p264 = scmp.lt.s32.totalorder %s30, 0
          %s265 = scalar_select %p264, %s30, 0
          %s266 = scalar_lea.vmem %s4, %s265
        $region28: #{tpu_custom_call.1} parent=11 // pred_fallthru
          _
        // Predicated region
        $region29: #{tpu_custom_call.1} parent=11 // pred_check
          %p267 = pneg %p178
        $region30: #{tpu_custom_call.1} parent=11 // pred_check_branch
          %269 = sbr.rel (%p267) target = $region32
        $region31: #{tpu_custom_call.1} parent=11 // pred_region
          %s270 = smul.u32 16, %s30
          %s272 = ssub.s32 1024, 1024
          %273 = vsyncadd [#allocation8], %s272
          %s274 = smul.addr %s270, 64
          %s275 = scalar_lea.hbm %s5, %s274
          %s276 = sshll.u32 [#allocation9], 4
          %s277 = int_to_ptr.vmem [resolvable:$true] %s276
          %282 = dma.hbm_to_vmem [thread:$0]  %s275, 1024, %s277, [#allocation8], 64, 64, 4
        $region32: #{tpu_custom_call.1} parent=11 // pred_fallthru
          _
        // Predicated region
        $region33: #{tpu_custom_call.1} parent=11 // pred_check
          %p283 = pneg %p199
        $region34: #{tpu_custom_call.1} parent=11 // pred_check_branch
          %285 = sbr.rel (%p283) target = $region36
        $region35: #{tpu_custom_call.1} parent=11 // pred_region
          _
        $region36: #{tpu_custom_call.1} parent=11 // pred_fallthru
          _
      $region12: #{tpu_custom_call.1} parent=5 // pred_fallthru
        _
      %p286 = scmp.lt.s32.totalorder %s20, 2
      // Predicated region
      $region37: #{tpu_custom_call.1} parent=5 // pred_check
        %p287 = pneg %p286
      $region38: #{tpu_custom_call.1} parent=5 // pred_check_branch
        %289 = sbr.rel (%p287) target = $region40
      $region39: #{tpu_custom_call.1} parent=5 // pred_region
        // Predicated region
        $region41: #{tpu_custom_call.1} parent=39 // pred_check
          %p290 = pneg %p52
        $region42: #{tpu_custom_call.1} parent=39 // pred_check_branch
          %292 = sbr.rel (%p290) target = $region44
        $region43: #{tpu_custom_call.1} parent=39 // pred_region
          %s293 = sand.u32 %s42, 1
          %s294 = scalar_lea.sflag [#allocation5], %s293
          %s295 = sand.u32 %s42, 1
          %s296 = smul.addr %s295, 8
          %s297 = scalar_lea.vmem [#allocation4], %s296
          %s299 = ssub.s32 128, 128
          %300 = vsyncadd %s294, %s299
          %s301 = smul.addr %s27, 128
          %s302 = scalar_lea.hbm %s0, %s301
          %s304 = sshll.u32 %s297, 4
          %s305 = int_to_ptr.vmem [resolvable:$true] %s304
          %307 = dma.hbm_to_vmem [thread:$0]  %s302, 128, %s305, %s294
        $region44: #{tpu_custom_call.1} parent=39 // pred_fallthru
          _
      $region40: #{tpu_custom_call.1} parent=5 // pred_fallthru
        _
      %p308 = scmp.le.s32.totalorder 1, %s20
      %p309 = scmp.lt.s32.totalorder %s20, 3
      %p310 = pnand %p308, %p309
      %p311 = pneg %p310
      // Predicated region
      $region45: #{tpu_custom_call.1} parent=5 // pred_check
        _
      $region46: #{tpu_custom_call.1} parent=5 // pred_check_branch
        %313 = sbr.rel (%p310) target = $region48
      $region47: #{tpu_custom_call.1} parent=5 // pred_region
        %s314 = ssub.s32 %s20, 1
        %s315 = sand.u32 %s45, 1
        %s316 = scalar_lea.sflag [#allocation5], %s315
        %s317 = sand.u32 %s45, 1
        %s318 = smul.addr %s317, 8
        %s319 = scalar_lea.vmem [#allocation4], %s318
        // Predicated region
        $region49: #{tpu_custom_call.1} parent=47 // pred_check
          %p320 = pneg %p58
        $region50: #{tpu_custom_call.1} parent=47 // pred_check_branch
          %322 = sbr.rel (%p320) target = $region52
        $region51: #{tpu_custom_call.1} parent=47 // pred_region
          %323 = dma.done %s316, 128
        $region52: #{tpu_custom_call.1} parent=47 // pred_fallthru
          _
        // Predicated region
        $region53: #{tpu_custom_call.1} parent=47 // pred_check
          %p324 = pneg %p126
        $region54: #{tpu_custom_call.1} parent=47 // pred_check_branch
          %326 = sbr.rel (%p324) target = $region56
        $region55: #{tpu_custom_call.1} parent=47 // pred_region
          %327 = dma.done [#allocation8], 1024
        $region56: #{tpu_custom_call.1} parent=47 // pred_fallthru
          _
        // Predicated region
        $region57: #{tpu_custom_call.1} parent=47 // pred_check
          %p328 = pneg %p178
        $region58: #{tpu_custom_call.1} parent=47 // pred_check_branch
          %330 = sbr.rel (%p328) target = $region60
        $region59: #{tpu_custom_call.1} parent=47 // pred_region
          %331 = dma.done [#allocation8], 1024
        $region60: #{tpu_custom_call.1} parent=47 // pred_fallthru
          _
        %s332 = sand.u32 %s45, 1
        %s333 = scalar_lea.sflag [#allocation5], %s332
        %s334 = sand.u32 %s45, 1
        %s335 = smul.addr %s334, 8
        %s336 = scalar_lea.vmem [#allocation4], %s335
        %p337 = pneg %p58
        %p338 = pneg %p55
        %p339 = pneg %p79
        %p340 = pneg %p76
        %p341 = pneg %p100
        %p342 = pneg %p97
        %p343 = pneg %p126
        %p344 = pneg %p123
        %p345 = scmp.lt.s32.totalorder %s30, 0
        %s346 = scalar_select %p345, %s30, 0
        %s347 = scalar_lea.vmem %s4, %s346
        %p348 = pneg %p152
        %p349 = pneg %p149
        %p350 = pneg %p178
        %p351 = pneg %p175
        %p352 = pneg %p199
        %p353 = pneg %p196
        %p354 = pneg %p225
        %p355 = pneg %p222
        %s356 = sand.u32 %s212, 1
        %s357 = scalar_lea.sflag [#allocation6], %s356
        %s358 = sand.u32 %s212, 1
        %s359 = smul.addr %s358, 8
        %s360 = scalar_lea.vmem [#allocation10], %s359
        %p361 = scmp.lt.s32.totalorder %s30, 0
        %s362 = scalar_select %p361, %s30, 0
        %s363 = scalar_lea.vmem %s4, %s362
        %s364 = smul.u32 16, %s30
        %p366 = scmp.eq.s32.totalorder %s30, 0
        // Predicated region
        $region61: #{tpu_custom_call.1} parent=47 // pred_check
          %p367 = pneg %p366
        $region62: #{tpu_custom_call.1} parent=47 // pred_check_branch
          %369 = sbr.rel (%p367) target = $region64
        $region63: #{tpu_custom_call.1} parent=47 // pred_region
          %370 = vst [vmem:[#allocation3] sm:$0xff] 0.0
          %v371 = vld [vmem:[%s319] sm:$0xff]
          %372 = vadd.xlane.f32.xlu0 %v371
          %v373 = vpop.xlane.xlu0 %372
          %v374 = vmul.f32 %v371, %v371
          %375 = vadd.xlane.f32.xlu0 %v374
          %v376 = vpop.xlane.xlu0 %375
          %v377 = vmul.f32 %v373, 0.03125
          %v378 = vmul.f32 %v376, 0.03125
          %v379 = vmul.f32 %v377, %v377
          %v380 = vsub.f32 %v378, %v379
          %v381 = vmax.f32 %v380, 0.0
          %v382 = vsub.f32 %v371, %v377
          %v383 = vadd.f32 %v381, 1e-05
          %v384 = vrsqrt.pop %v383
          %v385 = vmul.f32 %v382, %v384
          %v386 = vld [vmem:[%s1] sm:$0x1]
          %v388 = vlaneseq
          %v389 = vshrl.u32 %v388, 7
          %v390 = vsub.s32 0, %v389
          %v391 = vrot.slane %v386, %v390
          %v393 = vmul.f32 %v385, %v391
          %v394 = vld [vmem:[%s2] sm:$0x1]
          %v396 = vlaneseq
          %v397 = vshrl.u32 %v396, 7
          %v398 = vsub.s32 0, %v397
          %v399 = vrot.slane %v394, %v398
          %v401 = vadd.f32 %v393, %v399
          %v402 = vpack.c.bf16 %v401, %v401
          %403 = vst [vmem:[#allocation2] sm:$0xf] %v402
        $region64: #{tpu_custom_call.1} parent=47 // pred_fallthru
          _
        %v404 = vld [vmem:[#allocation2] sm:$0xf]
        %v405 = vld [vmem:[#allocation7] sm:$0xf]
        %v406 = vld [vmem:[#allocation7 + $0x4] sm:$0xf]
        %v407 = vld [vmem:[#allocation7 + $0x8] sm:$0xf]
        %v408 = vld [vmem:[#allocation7 + $0xc] sm:$0xf]
        %v409 = vld [vmem:[#allocation7 + $0x10] sm:$0xf]
        %v410 = vld [vmem:[#allocation7 + $0x14] sm:$0xf]
        %v411 = vld [vmem:[#allocation7 + $0x18] sm:$0xf]
        %v412 = vld [vmem:[#allocation7 + $0x1c] sm:$0xf]
        %v413 = vld [vmem:[#allocation7 + $0x20] sm:$0xf]
        %v414 = vld [vmem:[#allocation7 + $0x24] sm:$0xf]
        %v415 = vld [vmem:[#allocation7 + $0x28] sm:$0xf]
        %v416 = vld [vmem:[#allocation7 + $0x2c] sm:$0xf]
        %v417 = vld [vmem:[#allocation7 + $0x30] sm:$0xf]
        %v418 = vld [vmem:[#allocation7 + $0x34] sm:$0xf]
        %v419 = vld [vmem:[#allocation7 + $0x38] sm:$0xf]
        %v420 = vld [vmem:[#allocation7 + $0x3c] sm:$0xf]
        %v421 = vld [vmem:[%s363] sm:$0x1]
        %v423 = vlaneseq
        %v424 = vshrl.u32 %v423, 7
        %v425 = vsub.s32 0, %v424
        %v426 = vrot.slane %v421, %v425
        %v444 = vunpack.c.l.b16 %v405
        %v445 = vunpack.c.l.b16 %v406
        %v446 = vunpack.c.l.b16 %v407
        %v447 = vunpack.c.l.b16 %v408
        %v448 = vunpack.c.l.b16 %v409
        %v449 = vunpack.c.l.b16 %v410
        %v450 = vunpack.c.l.b16 %v411
        %v451 = vunpack.c.l.b16 %v412
        %v452 = vunpack.c.l.b16 %v413
        %v453 = vunpack.c.l.b16 %v414
        %v454 = vunpack.c.l.b16 %v415
        %v455 = vunpack.c.l.b16 %v416
        %v456 = vunpack.c.l.b16 %v417
        %v457 = vunpack.c.l.b16 %v418
        %v458 = vunpack.c.l.b16 %v419
        %v459 = vunpack.c.l.b16 %v420
        %v460 = vpack.c.b16 %v445, %v444
        %v461 = vpack.c.b16 %v447, %v446
        %v462 = vpack.c.b16 %v449, %v448
        %v463 = vpack.c.b16 %v451, %v450
        %v464 = vpack.c.b16 %v453, %v452
        %v465 = vpack.c.b16 %v455, %v454
        %v466 = vpack.c.b16 %v457, %v456
        %v467 = vpack.c.b16 %v459, %v458
        %476 = vmatprep.subr.bf16.mxu0 0
        %477 = vmatpush1.bf16.msra.mxu0 %v460
        %478 = vmatprep.subr.bf16.mxu0 0
        %479 = vmatpush1.bf16.msra.mxu0 %v461
        %480 = vmatprep.subr.bf16.mxu0 0
        %481 = vmatpush1.bf16.msra.mxu0 %v462
        %482 = vmatprep.subr.bf16.mxu0 0
        %483 = vmatpush1.bf16.msra.mxu0 %v463
        %484 = vmatprep.subr.bf16.mxu0 0
        %485 = vmatpush1.bf16.msra.mxu0 %v464
        %486 = vmatprep.subr.bf16.mxu0 0
        %487 = vmatpush1.bf16.msra.mxu0 %v465
        %488 = vmatprep.subr.bf16.mxu0 0
        %489 = vmatpush1.bf16.msra.mxu0 %v466
        %490 = vmatprep.subr.bf16.mxu0 0
        %491 = vmatpush1.bf16.msra.mxu0 %v467
        %492 = vmatprep.subr.bf16.mxu0 0
        %493 = vmatpush1.bf16.msra.mxu0 0
        %494 = vmatprep.subr.bf16.mxu0 0
        %495 = vmatpush1.bf16.msra.mxu0 0
        %496 = vmatprep.subr.bf16.mxu0 0
        %497 = vmatpush1.bf16.msra.mxu0 0
        %498 = vmatprep.subr.bf16.mxu0 0
        %499 = vmatpush1.bf16.msra.mxu0 0
        %500 = vmatprep.subr.bf16.mxu0 0
        %501 = vmatpush1.bf16.msra.mxu0 0
        %502 = vmatprep.subr.bf16.mxu0 0
        %503 = vmatpush1.bf16.msra.mxu0 0
        %504 = vmatprep.subr.bf16.mxu0 0
        %505 = vmatpush1.bf16.msra.mxu0 0
        %506 = vmatprep.subr.bf16.mxu0 0
        %507 = vmatpush1.bf16.msra.mxu0 0
        %508 = vmatprep.mubr.bf16.mxu0 0
        %509 = vmatmul.mubr.bf16.gmra.mrb[0].mxu0 %v404
        %v510 = vpop.f32.mrb[0].mxu0
        %v511 = vadd.f32 %v426, %v510
        %v512 = vpop.f32.mrb[0].mxu0
        %v513 = vpop.f32.mrb[0].mxu0
        %v514 = vpop.f32.mrb[0].mxu0
        %515 = vdwg.mxu0
        %v516 = vxor.u32 %v511, 2147483648
        %v517 = vmul.f32 %v516, 1.442695
        %v518 = vpow.pop %v517
        %v519 = vadd.f32 %v518, 1.0
        %v520 = vrcp.pop %v519
        %v521 = vmul.f32 1.0, %v520
        %v522 = vmul.f32 %v511, %v521
        %v523 = vld [vmem:[#allocation3] sm:$0xff]
        %v524 = vpack.c.bf16 %v522, %v522
        %v525 = vld [vmem:[#allocation9] sm:$0xf]
        %v526 = vld [vmem:[#allocation9 + $0x4] sm:$0xf]
        %v527 = vld [vmem:[#allocation9 + $0x8] sm:$0xf]
        %v528 = vld [vmem:[#allocation9 + $0xc] sm:$0xf]
        %v529 = vld [vmem:[#allocation9 + $0x10] sm:$0xf]
        %v530 = vld [vmem:[#allocation9 + $0x14] sm:$0xf]
        %v531 = vld [vmem:[#allocation9 + $0x18] sm:$0xf]
        %v532 = vld [vmem:[#allocation9 + $0x1c] sm:$0xf]
        %v533 = vld [vmem:[#allocation9 + $0x20] sm:$0xf]
        %v534 = vld [vmem:[#allocation9 + $0x24] sm:$0xf]
        %v535 = vld [vmem:[#allocation9 + $0x28] sm:$0xf]
        %v536 = vld [vmem:[#allocation9 + $0x2c] sm:$0xf]
        %v537 = vld [vmem:[#allocation9 + $0x30] sm:$0xf]
        %v538 = vld [vmem:[#allocation9 + $0x34] sm:$0xf]
        %v539 = vld [vmem:[#allocation9 + $0x38] sm:$0xf]
        %v540 = vld [vmem:[#allocation9 + $0x3c] sm:$0xf]
        %v557 = vunpack.c.l.b16 %v525
        %v558 = vunpack.c.l.b16 %v526
        %v559 = vunpack.c.l.b16 %v527
        %v560 = vunpack.c.l.b16 %v528
        %v561 = vunpack.c.l.b16 %v529
        %v562 = vunpack.c.l.b16 %v530
        %v563 = vunpack.c.l.b16 %v531
        %v564 = vunpack.c.l.b16 %v532
        %v565 = vunpack.c.l.b16 %v533
        %v566 = vunpack.c.l.b16 %v534
        %v567 = vunpack.c.l.b16 %v535
        %v568 = vunpack.c.l.b16 %v536
        %v569 = vunpack.c.l.b16 %v537
        %v570 = vunpack.c.l.b16 %v538
        %v571 = vunpack.c.l.b16 %v539
        %v572 = vunpack.c.l.b16 %v540
        %v573 = vpack.c.b16 %v558, %v557
        %v574 = vpack.c.b16 %v560, %v559
        %v575 = vpack.c.b16 %v562, %v561
        %v576 = vpack.c.b16 %v564, %v563
        %v577 = vpack.c.b16 %v566, %v565
        %v578 = vpack.c.b16 %v568, %v567
        %v579 = vpack.c.b16 %v570, %v569
        %v580 = vpack.c.b16 %v572, %v571
        %589 = vmatprep.subr.bf16.mxu0 0
        %590 = vmatpush1.bf16.msra.mxu0 %v573
        %591 = vmatprep.subr.bf16.mxu0 0
        %592 = vmatpush1.bf16.msra.mxu0 %v574
        %593 = vmatprep.subr.bf16.mxu0 0
        %594 = vmatpush1.bf16.msra.mxu0 %v575
        %595 = vmatprep.subr.bf16.mxu0 0
        %596 = vmatpush1.bf16.msra.mxu0 %v576
        %597 = vmatprep.subr.bf16.mxu0 0
        %598 = vmatpush1.bf16.msra.mxu0 %v577
        %599 = vmatprep.subr.bf16.mxu0 0
        %600 = vmatpush1.bf16.msra.mxu0 %v578
        %601 = vmatprep.subr.bf16.mxu0 0
        %602 = vmatpush1.bf16.msra.mxu0 %v579
        %603 = vmatprep.subr.bf16.mxu0 0
        %604 = vmatpush1.bf16.msra.mxu0 %v580
        %605 = vmatprep.subr.bf16.mxu0 0
        %606 = vmatpush1.bf16.msra.mxu0 0
        %607 = vmatprep.subr.bf16.mxu0 0
        %608 = vmatpush1.bf16.msra.mxu0 0
        %609 = vmatprep.subr.bf16.mxu0 0
        %610 = vmatpush1.bf16.msra.mxu0 0
        %611 = vmatprep.subr.bf16.mxu0 0
        %612 = vmatpush1.bf16.msra.mxu0 0
        %613 = vmatprep.subr.bf16.mxu0 0
        %614 = vmatpush1.bf16.msra.mxu0 0
        %615 = vmatprep.subr.bf16.mxu0 0
        %616 = vmatpush1.bf16.msra.mxu0 0
        %617 = vmatprep.subr.bf16.mxu0 0
        %618 = vmatpush1.bf16.msra.mxu0 0
        %619 = vmatprep.subr.bf16.mxu0 0
        %620 = vmatpush1.bf16.msra.mxu0 0
        %621 = vmatprep.mubr.bf16.mxu0 0
        %622 = vmatmul.mubr.bf16.gmra.mrb[0].mxu0 %v524
        %v623 = vpop.f32.mrb[0].mxu0
        %v624 = vadd.f32 0.0, %v623
        %v625 = vpop.f32.mrb[0].mxu0
        %v626 = vpop.f32.mrb[0].mxu0
        %v627 = vpop.f32.mrb[0].mxu0
        %628 = vdwg.mxu0
        %v629 = vadd.f32 %v523, %v624
        %630 = vst [vmem:[#allocation3] sm:$0xff] %v629
        // Predicated region
        $region65: #{tpu_custom_call.1} parent=47 // pred_check
          %p631 = pneg %p366
        $region66: #{tpu_custom_call.1} parent=47 // pred_check_branch
          %633 = sbr.rel (%p631) target = $region68
        $region67: #{tpu_custom_call.1} parent=47 // pred_region
          %v634 = vld [vmem:[#allocation3] sm:$0xff]
          %v635 = vld [vmem:[%s6] sm:$0x1]
          %v637 = vlaneseq
          %v638 = vshrl.u32 %v637, 7
          %v639 = vsub.s32 0, %v638
          %v640 = vrot.slane %v635, %v639
          %v642 = vadd.f32 %v634, %v640
          %v643 = vld [vmem:[%s319] sm:$0xff]
          %v644 = vadd.f32 %v642, %v643
          %645 = vst [vmem:[%s360] sm:$0xff] %v644
        $region68: #{tpu_custom_call.1} parent=47 // pred_fallthru
          _
        %s646 = sand.u32 %s212, 1
        %s647 = scalar_lea.sflag [#allocation6], %s646
        %s648 = sand.u32 %s212, 1
        %s649 = smul.addr %s648, 8
        %s650 = scalar_lea.vmem [#allocation10], %s649
        // Predicated region
        $region69: #{tpu_custom_call.1} parent=47 // pred_check
          %p651 = pneg %p222
        $region70: #{tpu_custom_call.1} parent=47 // pred_check_branch
          %653 = sbr.rel (%p651) target = $region72
        $region71: #{tpu_custom_call.1} parent=47 // pred_region
          %s655 = ssub.s32 128, 128
          %656 = vsyncadd %s647, %s655
          %s657 = smul.addr %s29, 128
          %s658 = scalar_lea.hbm %s7, %s657
          %s660 = sshll.u32 %s650, 4
          %s661 = int_to_ptr.vmem [resolvable:$true] %s660
          %663 = dma.vmem_to_hbm [thread:$0]  %s661, 128, %s658, %s647
        $region72: #{tpu_custom_call.1} parent=47 // pred_fallthru
          _
      $region48: #{tpu_custom_call.1} parent=5 // pred_fallthru
        _
      %p664 = scmp.le.s32.totalorder 2, %s20
      // Predicated region
      $region73: #{tpu_custom_call.1} parent=5 // pred_check
        %p665 = pneg %p664
      $region74: #{tpu_custom_call.1} parent=5 // pred_check_branch
        %667 = sbr.rel (%p665) target = $region76
      $region75: #{tpu_custom_call.1} parent=5 // pred_region
        %s668 = ssub.s32 %s20, 2
        // Predicated region
        $region77: #{tpu_custom_call.1} parent=75 // pred_check
          %p669 = pneg %p228
        $region78: #{tpu_custom_call.1} parent=75 // pred_check_branch
          %671 = sbr.rel (%p669) target = $region80
        $region79: #{tpu_custom_call.1} parent=75 // pred_region
          %s672 = sand.u32 %s213, 1
          %s673 = scalar_lea.sflag [#allocation6], %s672
          %s674 = sand.u32 %s213, 1
          %s675 = smul.addr %s674, 8
          %s676 = scalar_lea.vmem [#allocation10], %s675
          %677 = dma.done %s673, 128
        $region80: #{tpu_custom_call.1} parent=75 // pred_fallthru
          _
      $region76: #{tpu_custom_call.1} parent=5 // pred_fallthru
        _
    $region6: #{tpu_custom_call.1} parent=1 // loop_footer
      %s24 = sadd.s32 1, %s20
    $region7: #{tpu_custom_call.1} parent=1 // loop_footer_branch
      %19 = sbr.rel target = $region3
    $region8: #{tpu_custom_call.1} parent=1 // loop_exit
      _
    %678 = vsyncpa [#allocation5], 1
    %s679 = scalar_lea.sflag [#allocation5], 1
    %680 = vsyncpa %s679, 1
    %681 = vsyncpa [#allocation8], 1
    %682 = vsyncpa [#allocation6], 1
    %s683 = scalar_lea.sflag [#allocation6], 1
    %684 = vsyncpa %s683, 1

// kernel: tpu_custom_call.1
$region0: #{tpu_custom_call.1}
  #allocation0 [shape = 'u32[]', space=smem, size = 0x4, offset = 0x4, fixed_abs, tag = 'smem constant byte address 0x4 - core index']
  #allocation1 [shape = 'u32[144,128]{1,0:T(1,128)}', space=vmem, size = 0x12000, scoped, tag = 'internal scratch']
  #allocation2 [shape = 'bf16[8,128]{1,0:T(8,128)(2,1)}', space=vmem, size = 0x800, scoped, tag = 'scratch operand']
  #allocation3 [shape = 'f32[8,128]{1,0:T(8,128)}', space=vmem, size = 0x1000, scoped, tag = 'scratch operand']
  %s0 = inlined_call_operand.hbm [shape: f32[16,128], index: 0, kind: input, shape index: {}]
  %s1 = inlined_call_operand.vmem [shape: f32[1,128], index: 1, kind: input, shape index: {}]
  %s2 = inlined_call_operand.vmem [shape: f32[1,128], index: 2, kind: input, shape index: {}]
  %s3 = inlined_call_operand.hbm [shape: bf16[128,128], index: 3, kind: input, shape index: {}]
  %s4 = inlined_call_operand.vmem [shape: f32[1,128], index: 4, kind: input, shape index: {}]
  %s5 = inlined_call_operand.hbm [shape: bf16[128,128], index: 5, kind: input, shape index: {}]
  %s6 = inlined_call_operand.vmem [shape: f32[1,128], index: 6, kind: input, shape index: {}]
  %s7 = inlined_call_operand.hbm [shape: f32[16,128], index: 7, kind: output, shape index: {}]
  %s8 = sld [smem:[#allocation0]]
  $region81: #{tpu_custom_call.1} parent=0
    _
  %s10 = ssub.s32 1, %s8
  %s11 = scalar_select 0, %s10, %s8
  $region1: #{tpu_custom_call.1} parent=0
    #allocation4 [shape = 'u8[8192]{0}', space=vmem, size = 0x2000, scoped, tag = 'input window, operand 0']
    #allocation5 [shape = 's32[2]{0}', space=sflag, size = 0x8, scoped, tag = 'scoped memory for tpu_custom_call.1']
    #allocation6 [shape = 's32[2]{0}', space=sflag, size = 0x8, scoped, tag = 'scoped memory for tpu_custom_call.1']
    #allocation7 [shape = 'u8[32768]{0}', space=vmem, size = 0x8000, scoped, tag = 'input window, operand 3, single buffered']
    #allocation8 [shape = 's32[1]{0}', space=sflag, size = 0x4, scoped, tag = 'scoped memory for tpu_custom_call.1']
    #allocation9 [shape = 'u8[32768]{0}', space=vmem, size = 0x8000, scoped, tag = 'input window, operand 5, single buffered']
    #allocation10 [shape = 'u8[8192]{0}', space=vmem, size = 0x2000, scoped, tag = 'output window, operand 0']
    %12 = vsyncpa [#allocation5], 0
    %s13 = scalar_lea.sflag [#allocation5], 1
    %14 = vsyncpa %s13, 0
    %15 = vsyncpa [#allocation8], 0
    %16 = vsyncpa [#allocation6], 0
    %s17 = scalar_lea.sflag [#allocation6], 1
    %18 = vsyncpa %s17, 0
    loop: start=0, step=1, limit=4
    $region2: #{tpu_custom_call.1} parent=1 // loop_pre_header
      _
    $region3: #{tpu_custom_call.1} parent=1 // loop_header
      %s20 = sphi 0, %s24
      %p21 = scmp.ge.s32.totalorder %s20, 4
      %s27 = sphi 0, %s39
      %s28 = sphi 0, %s35
      %s29 = sphi 0, %s27
      %s30 = sphi 0, %s28
      %s31 = sphi 0, %s29
      %s32 = sphi 0, %s30
      %s42 = sphi 0, %s44
      %s45 = sphi 0, %s42
      %s46 = sphi 0, %s45
      %s62 = sphi 0, %s46
      %s66 = sphi 0, %s66
      %s68 = sphi 0, %s66
      %s69 = sphi 0, %s68
      %s83 = sphi 0, %s69
      %s87 = sphi 0, %s87
      %s89 = sphi 0, %s87
      %s90 = sphi 0, %s89
      %s104 = sphi 0, %s90
      %s110 = sphi 0, %s112
      %s113 = sphi 0, %s110
      %s114 = sphi 0, %s113
      %s130 = sphi 0, %s114
      %s136 = sphi 0, %s138
      %s139 = sphi 0, %s136
      %s140 = sphi 0, %s139
      %s156 = sphi 0, %s140
      %s162 = sphi 0, %s164
      %s165 = sphi 0, %s162
      %s166 = sphi 0, %s165
      %s182 = sphi 0, %s166
      %s186 = sphi 0, %s186
      %s188 = sphi 0, %s186
      %s189 = sphi 0, %s188
      %s203 = sphi 0, %s189
      %s209 = sphi 0, %s211
      %s212 = sphi 0, %s209
      %s213 = sphi 0, %s212
      %s229 = sphi 0, %s213
    $region4: #{tpu_custom_call.1} parent=1 // loop_header_branch
      %23 = sbr.rel (%p21) target = $region8
    $region5: #{tpu_custom_call.1} parent=1 // loop_body
      %s25 = ssub.s32 %s20, 1
      %s26 = ssub.s32 %s20, 2
      %s33 = sadd.s32 1, %s28
      %p34 = scmp.ge.s32.totalorder %s33, 1
      %s35 = scalar_select %p34, 0, %s33
      %s36 = sadd.s32 1, %s27
      %s37 = scalar_select %p34, %s36, %s27
      %p38 = scmp.ge.s32.totalorder %s37, 2
      %s39 = scalar_select %p38, 0, %s37
      %s40 = ssub.s32 %s27, %s39
      %p41 = scmp.eq.s32.totalorder %s40, 0
      %s43 = sadd.s32 %s42, 1
      %s44 = scalar_select %p41, %s42, %s43
      %p47 = pneg %p41
      %p48 = scmp.eq.s32.totalorder %s20, 1
      %p49 = por %p47, %p48
      %p50 = scmp.ne.s32.totalorder %s42, %s45
      %p51 = scmp.eq.s32.totalorder %s20, 0
      %p52 = por %p50, %p51
      %p53 = scmp.ne.s32.totalorder %s42, %s45
      %p54 = scmp.eq.s32.totalorder %s25, 1
      %p55 = por %p53, %p54
      %p56 = scmp.ne.s32.totalorder %s45, %s46
      %p57 = scmp.eq.s32.totalorder %s25, 0
      %p58 = por %p56, %p57
      %p59 = scmp.ne.s32.totalorder %s45, %s46
      %p60 = scmp.eq.s32.totalorder %s26, 1
      %p61 = por %p59, %p60
      %p63 = scmp.ne.s32.totalorder %s46, %s62
      %p64 = scmp.eq.s32.totalorder %s26, 0
      %p65 = por %p63, %p64
      %s67 = sadd.s32 %s66, 1
      %p70 = scmp.eq.s32.totalorder %s20, 1
      %p71 = scmp.ne.s32.totalorder %s66, %s68
      %p72 = scmp.eq.s32.totalorder %s20, 0
      %p73 = por %p71, %p72
      %p74 = scmp.ne.s32.totalorder %s66, %s68
      %p75 = scmp.eq.s32.totalorder %s25, 1
      %p76 = por %p74, %p75
      %p77 = scmp.ne.s32.totalorder %s68, %s69
      %p78 = scmp.eq.s32.totalorder %s25, 0
      %p79 = por %p77, %p78
      %p80 = scmp.ne.s32.totalorder %s68, %s69
      %p81 = scmp.eq.s32.totalorder %s26, 1
      %p82 = por %p80, %p81
      %p84 = scmp.ne.s32.totalorder %s69, %s83
      %p85 = scmp.eq.s32.totalorder %s26, 0
      %p86 = por %p84, %p85
      %s88 = sadd.s32 %s87, 1
      %p91 = scmp.eq.s32.totalorder %s20, 1
      %p92 = scmp.ne.s32.totalorder %s87, %s89
      %p93 = scmp.eq.s32.totalorder %s20, 0
      %p94 = por %p92, %p93
      %p95 = scmp.ne.s32.totalorder %s87, %s89
      %p96 = scmp.eq.s32.totalorder %s25, 1
      %p97 = por %p95, %p96
      %p98 = scmp.ne.s32.totalorder %s89, %s90
      %p99 = scmp.eq.s32.totalorder %s25, 0
      %p100 = por %p98, %p99
      %p101 = scmp.ne.s32.totalorder %s89, %s90
      %p102 = scmp.eq.s32.totalorder %s26, 1
      %p103 = por %p101, %p102
      %p105 = scmp.ne.s32.totalorder %s90, %s104
      %p106 = scmp.eq.s32.totalorder %s26, 0
      %p107 = por %p105, %p106
      %s108 = ssub.s32 %s28, %s35
      %p109 = scmp.eq.s32.totalorder %s108, 0
      %s111 = sadd.s32 %s110, 1
      %s112 = scalar_select %p109, %s110, %s111
      %p115 = pneg %p109
      %p116 = scmp.eq.s32.totalorder %s20, 1
      %p117 = por %p115, %p116
      %p118 = scmp.ne.s32.totalorder %s110, %s113
      %p119 = scmp.eq.s32.totalorder %s20, 0
      %p120 = por %p118, %p119
      %p121 = scmp.ne.s32.totalorder %s110, %s113
      %p122 = scmp.eq.s32.totalorder %s25, 1
      %p123 = por %p121, %p122
      %p124 = scmp.ne.s32.totalorder %s113, %s114
      %p125 = scmp.eq.s32.totalorder %s25, 0
      %p126 = por %p124, %p125
      %p127 = scmp.ne.s32.totalorder %s113, %s114
      %p128 = scmp.eq.s32.totalorder %s26, 1
      %p129 = por %p127, %p128
      %p131 = scmp.ne.s32.totalorder %s114, %s130
      %p132 = scmp.eq.s32.totalorder %s26, 0
      %p133 = por %p131, %p132
      %s134 = ssub.s32 %s28, %s35
      %p135 = scmp.eq.s32.totalorder %s134, 0
      %s137 = sadd.s32 %s136, 1
      %s138 = scalar_select %p135, %s136, %s137
      %p141 = pneg %p135
      %p142 = scmp.eq.s32.totalorder %s20, 1
      %p143 = por %p141, %p142
      %p144 = scmp.ne.s32.totalorder %s136, %s139
      %p145 = scmp.eq.s32.totalorder %s20, 0
      %p146 = por %p144, %p145
      %p147 = scmp.ne.s32.totalorder %s136, %s139
      %p148 = scmp.eq.s32.totalorder %s25, 1
      %p149 = por %p147, %p148
      %p150 = scmp.ne.s32.totalorder %s139, %s140
      %p151 = scmp.eq.s32.totalorder %s25, 0
      %p152 = por %p150, %p151
      %p153 = scmp.ne.s32.totalorder %s139, %s140
      %p154 = scmp.eq.s32.totalorder %s26, 1
      %p155 = por %p153, %p154
      %p157 = scmp.ne.s32.totalorder %s140, %s156
      %p158 = scmp.eq.s32.totalorder %s26, 0
      %p159 = por %p157, %p158
      %s160 = ssub.s32 %s28, %s35
      %p161 = scmp.eq.s32.totalorder %s160, 0
      %s163 = sadd.s32 %s162, 1
      %s164 = scalar_select %p161, %s162, %s163
      %p167 = pneg %p161
      %p168 = scmp.eq.s32.totalorder %s20, 1
      %p169 = por %p167, %p168
      %p170 = scmp.ne.s32.totalorder %s162, %s165
      %p171 = scmp.eq.s32.totalorder %s20, 0
      %p172 = por %p170, %p171
      %p173 = scmp.ne.s32.totalorder %s162, %s165
      %p174 = scmp.eq.s32.totalorder %s25, 1
      %p175 = por %p173, %p174
      %p176 = scmp.ne.s32.totalorder %s165, %s166
      %p177 = scmp.eq.s32.totalorder %s25, 0
      %p178 = por %p176, %p177
      %p179 = scmp.ne.s32.totalorder %s165, %s166
      %p180 = scmp.eq.s32.totalorder %s26, 1
      %p181 = por %p179, %p180
      %p183 = scmp.ne.s32.totalorder %s166, %s182
      %p184 = scmp.eq.s32.totalorder %s26, 0
      %p185 = por %p183, %p184
      %s187 = sadd.s32 %s186, 1
      %p190 = scmp.eq.s32.totalorder %s20, 1
      %p191 = scmp.ne.s32.totalorder %s186, %s188
      %p192 = scmp.eq.s32.totalorder %s20, 0
      %p193 = por %p191, %p192
      %p194 = scmp.ne.s32.totalorder %s186, %s188
      %p195 = scmp.eq.s32.totalorder %s25, 1
      %p196 = por %p194, %p195
      %p197 = scmp.ne.s32.totalorder %s188, %s189
      %p198 = scmp.eq.s32.totalorder %s25, 0
      %p199 = por %p197, %p198
      %p200 = scmp.ne.s32.totalorder %s188, %s189
      %p201 = scmp.eq.s32.totalorder %s26, 1
      %p202 = por %p200, %p201
      %p204 = scmp.ne.s32.totalorder %s189, %s203
      %p205 = scmp.eq.s32.totalorder %s26, 0
      %p206 = por %p204, %p205
      %s207 = ssub.s32 %s27, %s39
      %p208 = scmp.eq.s32.totalorder %s207, 0
      %s210 = sadd.s32 %s209, 1
      %s211 = scalar_select %p208, %s209, %s210
      %p214 = pneg %p208
      %p215 = scmp.eq.s32.totalorder %s20, 1
      %p216 = por %p214, %p215
      %p217 = scmp.ne.s32.totalorder %s209, %s212
      %p218 = scmp.eq.s32.totalorder %s20, 0
      %p219 = por %p217, %p218
      %p220 = scmp.ne.s32.totalorder %s209, %s212
      %p221 = scmp.eq.s32.totalorder %s25, 1
      %p222 = por %p220, %p221
      %p223 = scmp.ne.s32.totalorder %s212, %s213
      %p224 = scmp.eq.s32.totalorder %s25, 0
      %p225 = por %p223, %p224
      %p226 = scmp.ne.s32.totalorder %s212, %s213
      %p227 = scmp.eq.s32.totalorder %s26, 1
      %p228 = por %p226, %p227
      %p230 = scmp.ne.s32.totalorder %s213, %s229
      %p231 = scmp.eq.s32.totalorder %s26, 0
      %p232 = por %p230, %p231
      %p233 = scmp.le.s32.totalorder 1, %s20
      %p234 = scmp.lt.s32.totalorder %s20, 3
      %p235 = pnand %p233, %p234
      %p236 = pneg %p235
      // Predicated region
      $region9: #{tpu_custom_call.1} parent=5 // pred_check
        _
      $region10: #{tpu_custom_call.1} parent=5 // pred_check_branch
        %238 = sbr.rel (%p235) target = $region12
      $region11: #{tpu_custom_call.1} parent=5 // pred_region
        %s239 = ssub.s32 %s20, 1
        // Predicated region
        $region13: #{tpu_custom_call.1} parent=11 // pred_check
          %p240 = pneg %p79
        $region14: #{tpu_custom_call.1} parent=11 // pred_check_branch
          %242 = sbr.rel (%p240) target = $region16
        $region15: #{tpu_custom_call.1} parent=11 // pred_region
          _
        $region16: #{tpu_custom_call.1} parent=11 // pred_fallthru
          _
        // Predicated region
        $region17: #{tpu_custom_call.1} parent=11 // pred_check
          %p243 = pneg %p100
        $region18: #{tpu_custom_call.1} parent=11 // pred_check_branch
          %245 = sbr.rel (%p243) target = $region20
        $region19: #{tpu_custom_call.1} parent=11 // pred_region
          _
        $region20: #{tpu_custom_call.1} parent=11 // pred_fallthru
          _
        // Predicated region
        $region21: #{tpu_custom_call.1} parent=11 // pred_check
          %p246 = pneg %p126
        $region22: #{tpu_custom_call.1} parent=11 // pred_check_branch
          %248 = sbr.rel (%p246) target = $region24
        $region23: #{tpu_custom_call.1} parent=11 // pred_region
          %s250 = ssub.s32 1024, 1024
          %251 = vsyncadd [#allocation8], %s250
          %s252 = smul.addr %s30, 64
          %s253 = scalar_lea.hbm %s3, %s252
          %s254 = sshll.u32 [#allocation7], 4
          %s255 = int_to_ptr.vmem [resolvable:$true] %s254
          %260 = dma.hbm_to_vmem [thread:$0]  %s253, 1024, %s255, [#allocation8], 64, 64, 4
        $region24: #{tpu_custom_call.1} parent=11 // pred_fallthru
          _
        // Predicated region
        $region25: #{tpu_custom_call.1} parent=11 // pred_check
          %p261 = pneg %p152
        $region26: #{tpu_custom_call.1} parent=11 // pred_check_branch
          %263 = sbr.rel (%p261) target = $region28
        $region27: #{tpu_custom_call.1} parent=11 // pred_region
          %p264 = scmp.lt.s32.totalorder %s30, 0
          %s265 = scalar_select %p264, %s30, 0
          %s266 = scalar_lea.vmem %s4, %s265
        $region28: #{tpu_custom_call.1} parent=11 // pred_fallthru
          _
        // Predicated region
        $region29: #{tpu_custom_call.1} parent=11 // pred_check
          %p267 = pneg %p178
        $region30: #{tpu_custom_call.1} parent=11 // pred_check_branch
          %269 = sbr.rel (%p267) target = $region32
        $region31: #{tpu_custom_call.1} parent=11 // pred_region
          %s270 = smul.u32 16, %s30
          %s272 = ssub.s32 1024, 1024
          %273 = vsyncadd [#allocation8], %s272
          %s274 = smul.addr %s270, 64
          %s275 = scalar_lea.hbm %s5, %s274
          %s276 = sshll.u32 [#allocation9], 4
          %s277 = int_to_ptr.vmem [resolvable:$true] %s276
          %282 = dma.hbm_to_vmem [thread:$0]  %s275, 1024, %s277, [#allocation8], 64, 64, 4
        $region32: #{tpu_custom_call.1} parent=11 // pred_fallthru
          _
        // Predicated region
        $region33: #{tpu_custom_call.1} parent=11 // pred_check
          %p283 = pneg %p199
        $region34: #{tpu_custom_call.1} parent=11 // pred_check_branch
          %285 = sbr.rel (%p283) target = $region36
        $region35: #{tpu_custom_call.1} parent=11 // pred_region
          _
        $region36: #{tpu_custom_call.1} parent=11 // pred_fallthru
          _
      $region12: #{tpu_custom_call.1} parent=5 // pred_fallthru
        _
      %p286 = scmp.lt.s32.totalorder %s20, 2
      // Predicated region
      $region37: #{tpu_custom_call.1} parent=5 // pred_check
        %p287 = pneg %p286
      $region38: #{tpu_custom_call.1} parent=5 // pred_check_branch
        %289 = sbr.rel (%p287) target = $region40
      $region39: #{tpu_custom_call.1} parent=5 // pred_region
        // Predicated region
        $region41: #{tpu_custom_call.1} parent=39 // pred_check
          %p290 = pneg %p52
        $region42: #{tpu_custom_call.1} parent=39 // pred_check_branch
          %292 = sbr.rel (%p290) target = $region44
        $region43: #{tpu_custom_call.1} parent=39 // pred_region
          %s293 = sand.u32 %s42, 1
          %s294 = scalar_lea.sflag [#allocation5], %s293
          %s295 = sand.u32 %s42, 1
          %s296 = smul.addr %s295, 8
          %s297 = scalar_lea.vmem [#allocation4], %s296
          %s299 = ssub.s32 128, 128
          %300 = vsyncadd %s294, %s299
          %s301 = smul.addr %s27, 128
          %s302 = scalar_lea.hbm %s0, %s301
          %s304 = sshll.u32 %s297, 4
          %s305 = int_to_ptr.vmem [resolvable:$true] %s304
          %307 = dma.hbm_to_vmem [thread:$0]  %s302, 128, %s305, %s294
        $region44: #{tpu_custom_call.1} parent=39 // pred_fallthru
          _
      $region40: #{tpu_custom_call.1} parent=5 // pred_fallthru
        _
      %p308 = scmp.le.s32.totalorder 1, %s20
      %p309 = scmp.lt.s32.totalorder %s20, 3
      %p310 = pnand %p308, %p309
      %p311 = pneg %p310
      // Predicated region
      $region45: #{tpu_custom_call.1} parent=5 // pred_check
        _
      $region46: #{tpu_custom_call.1} parent=5 // pred_check_branch
        %313 = sbr.rel (%p310) target = $region48
      $region47: #{tpu_custom_call.1} parent=5 // pred_region
        %s314 = ssub.s32 %s20, 1
        %s315 = sand.u32 %s45, 1
        %s316 = scalar_lea.sflag [#allocation5], %s315
        %s317 = sand.u32 %s45, 1
        %s318 = smul.addr %s317, 8
        %s319 = scalar_lea.vmem [#allocation4], %s318
        // Predicated region
        $region49: #{tpu_custom_call.1} parent=47 // pred_check
          %p320 = pneg %p58
        $region50: #{tpu_custom_call.1} parent=47 // pred_check_branch
          %322 = sbr.rel (%p320) target = $region52
        $region51: #{tpu_custom_call.1} parent=47 // pred_region
          %323 = dma.done %s316, 128
        $region52: #{tpu_custom_call.1} parent=47 // pred_fallthru
          _
        // Predicated region
        $region53: #{tpu_custom_call.1} parent=47 // pred_check
          %p324 = pneg %p126
        $region54: #{tpu_custom_call.1} parent=47 // pred_check_branch
          %326 = sbr.rel (%p324) target = $region56
        $region55: #{tpu_custom_call.1} parent=47 // pred_region
          %327 = dma.done [#allocation8], 1024
        $region56: #{tpu_custom_call.1} parent=47 // pred_fallthru
          _
        // Predicated region
        $region57: #{tpu_custom_call.1} parent=47 // pred_check
          %p328 = pneg %p178
        $region58: #{tpu_custom_call.1} parent=47 // pred_check_branch
          %330 = sbr.rel (%p328) target = $region60
        $region59: #{tpu_custom_call.1} parent=47 // pred_region
          %331 = dma.done [#allocation8], 1024
        $region60: #{tpu_custom_call.1} parent=47 // pred_fallthru
          _
        %s332 = sand.u32 %s45, 1
        %s333 = scalar_lea.sflag [#allocation5], %s332
        %s334 = sand.u32 %s45, 1
        %s335 = smul.addr %s334, 8
        %s336 = scalar_lea.vmem [#allocation4], %s335
        %p337 = pneg %p58
        %p338 = pneg %p55
        %p339 = pneg %p79
        %p340 = pneg %p76
        %p341 = pneg %p100
        %p342 = pneg %p97
        %p343 = pneg %p126
        %p344 = pneg %p123
        %p345 = scmp.lt.s32.totalorder %s30, 0
        %s346 = scalar_select %p345, %s30, 0
        %s347 = scalar_lea.vmem %s4, %s346
        %p348 = pneg %p152
        %p349 = pneg %p149
        %p350 = pneg %p178
        %p351 = pneg %p175
        %p352 = pneg %p199
        %p353 = pneg %p196
        %p354 = pneg %p225
        %p355 = pneg %p222
        %s356 = sand.u32 %s212, 1
        %s357 = scalar_lea.sflag [#allocation6], %s356
        %s358 = sand.u32 %s212, 1
        %s359 = smul.addr %s358, 8
        %s360 = scalar_lea.vmem [#allocation10], %s359
        %p361 = scmp.lt.s32.totalorder %s30, 0
        %s362 = scalar_select %p361, %s30, 0
        %s363 = scalar_lea.vmem %s4, %s362
        %s364 = smul.u32 16, %s30
        %p366 = scmp.eq.s32.totalorder %s30, 0
        // Predicated region
        $region61: #{tpu_custom_call.1} parent=47 // pred_check
          %p367 = pneg %p366
        $region62: #{tpu_custom_call.1} parent=47 // pred_check_branch
          %369 = sbr.rel (%p367) target = $region64
        $region63: #{tpu_custom_call.1} parent=47 // pred_region
          %370 = vst [vmem:[#allocation3] sm:$0xff] 0.0
          %v371 = vld [vmem:[%s319] sm:$0xff]
          %372 = vadd.xlane.f32.xlu0 %v371
          %v373 = vpop.xlane.xlu0 %372
          %v374 = vmul.f32 %v371, %v371
          %375 = vadd.xlane.f32.xlu0 %v374
          %v376 = vpop.xlane.xlu0 %375
          %v377 = vmul.f32 %v373, 0.03125
          %v378 = vmul.f32 %v376, 0.03125
          %v379 = vmul.f32 %v377, %v377
          %v380 = vsub.f32 %v378, %v379
          %v381 = vmax.f32 %v380, 0.0
          %v382 = vsub.f32 %v371, %v377
          %v383 = vadd.f32 %v381, 1e-05
          %v384 = vrsqrt.pop %v383
          %v385 = vmul.f32 %v382, %v384
          %v386 = vld [vmem:[%s1] sm:$0x1]
          %v388 = vlaneseq
          %v389 = vshrl.u32 %v388, 7
          %v390 = vsub.s32 0, %v389
          %v391 = vrot.slane %v386, %v390
          %v393 = vmul.f32 %v385, %v391
          %v394 = vld [vmem:[%s2] sm:$0x1]
          %v396 = vlaneseq
          %v397 = vshrl.u32 %v396, 7
          %v398 = vsub.s32 0, %v397
          %v399 = vrot.slane %v394, %v398
          %v401 = vadd.f32 %v393, %v399
          %v402 = vpack.c.bf16 %v401, %v401
          %403 = vst [vmem:[#allocation2] sm:$0xf] %v402
        $region64: #{tpu_custom_call.1} parent=47 // pred_fallthru
          _
        %v404 = vld [vmem:[#allocation2] sm:$0xf]
        %v405 = vld [vmem:[#allocation7] sm:$0xf]
        %v406 = vld [vmem:[#allocation7 + $0x4] sm:$0xf]
        %v407 = vld [vmem:[#allocation7 + $0x8] sm:$0xf]
        %v408 = vld [vmem:[#allocation7 + $0xc] sm:$0xf]
        %v409 = vld [vmem:[#allocation7 + $0x10] sm:$0xf]
        %v410 = vld [vmem:[#allocation7 + $0x14] sm:$0xf]
        %v411 = vld [vmem:[#allocation7 + $0x18] sm:$0xf]
        %v412 = vld [vmem:[#allocation7 + $0x1c] sm:$0xf]
        %v413 = vld [vmem:[#allocation7 + $0x20] sm:$0xf]
        %v414 = vld [vmem:[#allocation7 + $0x24] sm:$0xf]
        %v415 = vld [vmem:[#allocation7 + $0x28] sm:$0xf]
        %v416 = vld [vmem:[#allocation7 + $0x2c] sm:$0xf]
        %v417 = vld [vmem:[#allocation7 + $0x30] sm:$0xf]
        %v418 = vld [vmem:[#allocation7 + $0x34] sm:$0xf]
        %v419 = vld [vmem:[#allocation7 + $0x38] sm:$0xf]
        %v420 = vld [vmem:[#allocation7 + $0x3c] sm:$0xf]
        %v421 = vld [vmem:[%s363] sm:$0x1]
        %v423 = vlaneseq
        %v424 = vshrl.u32 %v423, 7
        %v425 = vsub.s32 0, %v424
        %v426 = vrot.slane %v421, %v425
        %v444 = vunpack.c.l.b16 %v405
        %v445 = vunpack.c.l.b16 %v406
        %v446 = vunpack.c.l.b16 %v407
        %v447 = vunpack.c.l.b16 %v408
        %v448 = vunpack.c.l.b16 %v409
        %v449 = vunpack.c.l.b16 %v410
        %v450 = vunpack.c.l.b16 %v411
        %v451 = vunpack.c.l.b16 %v412
        %v452 = vunpack.c.l.b16 %v413
        %v453 = vunpack.c.l.b16 %v414
        %v454 = vunpack.c.l.b16 %v415
        %v455 = vunpack.c.l.b16 %v416
        %v456 = vunpack.c.l.b16 %v417
        %v457 = vunpack.c.l.b16 %v418
        %v458 = vunpack.c.l.b16 %v419
        %v459 = vunpack.c.l.b16 %v420
        %v460 = vpack.c.b16 %v445, %v444
        %v461 = vpack.c.b16 %v447, %v446
        %v462 = vpack.c.b16 %v449, %v448
        %v463 = vpack.c.b16 %v451, %v450
        %v464 = vpack.c.b16 %v453, %v452
        %v465 = vpack.c.b16 %v455, %v454
        %v466 = vpack.c.b16 %v457, %v456
        %v467 = vpack.c.b16 %v459, %v458
        %476 = vmatprep.subr.bf16.mxu0 0
        %477 = vmatpush1.bf16.msra.mxu0 %v460
        %478 = vmatprep.subr.bf16.mxu0 0
        %479 = vmatpush1.bf16.msra.mxu0 %v461
        %480 = vmatprep.subr.bf16.mxu0 0
        %481 = vmatpush1.bf16.msra.mxu0 %v462
        %482 = vmatprep.subr.bf16.mxu0 0
        %483 = vmatpush1.bf16.msra.mxu0 %v463
        %484 = vmatprep.subr.bf16.mxu0 0
        %485 = vmatpush1.bf16.msra.mxu0 %v464
        %486 = vmatprep.subr.bf16.mxu0 0
        %487 = vmatpush1.bf16.msra.mxu0 %v465
        %488 = vmatprep.subr.bf16.mxu0 0
        %489 = vmatpush1.bf16.msra.mxu0 %v466
        %490 = vmatprep.subr.bf16.mxu0 0
        %491 = vmatpush1.bf16.msra.mxu0 %v467
        %492 = vmatprep.subr.bf16.mxu0 0
        %493 = vmatpush1.bf16.msra.mxu0 0
        %494 = vmatprep.subr.bf16.mxu0 0
        %495 = vmatpush1.bf16.msra.mxu0 0
        %496 = vmatprep.subr.bf16.mxu0 0
        %497 = vmatpush1.bf16.msra.mxu0 0
        %498 = vmatprep.subr.bf16.mxu0 0
        %499 = vmatpush1.bf16.msra.mxu0 0
        %500 = vmatprep.subr.bf16.mxu0 0
        %501 = vmatpush1.bf16.msra.mxu0 0
        %502 = vmatprep.subr.bf16.mxu0 0
        %503 = vmatpush1.bf16.msra.mxu0 0
        %504 = vmatprep.subr.bf16.mxu0 0
        %505 = vmatpush1.bf16.msra.mxu0 0
        %506 = vmatprep.subr.bf16.mxu0 0
        %507 = vmatpush1.bf16.msra.mxu0 0
        %508 = vmatprep.mubr.bf16.mxu0 0
        %509 = vmatmul.mubr.bf16.gmra.mrb[0].mxu0 %v404
        %v510 = vpop.f32.mrb[0].mxu0
        %v511 = vadd.f32 %v426, %v510
        %v512 = vpop.f32.mrb[0].mxu0
        %v513 = vpop.f32.mrb[0].mxu0
        %v514 = vpop.f32.mrb[0].mxu0
        %515 = vdwg.mxu0
        %v516 = vxor.u32 %v511, 2147483648
        %v517 = vmul.f32 %v516, 1.442695
        %v518 = vpow.pop %v517
        %v519 = vadd.f32 %v518, 1.0
        %v520 = vrcp.pop %v519
        %v521 = vmul.f32 1.0, %v520
        %v522 = vmul.f32 %v511, %v521
        %v523 = vld [vmem:[#allocation3] sm:$0xff]
        %v524 = vpack.c.bf16 %v522, %v522
        %v525 = vld [vmem:[#allocation9] sm:$0xf]
        %v526 = vld [vmem:[#allocation9 + $0x4] sm:$0xf]
        %v527 = vld [vmem:[#allocation9 + $0x8] sm:$0xf]
        %v528 = vld [vmem:[#allocation9 + $0xc] sm:$0xf]
        %v529 = vld [vmem:[#allocation9 + $0x10] sm:$0xf]
        %v530 = vld [vmem:[#allocation9 + $0x14] sm:$0xf]
        %v531 = vld [vmem:[#allocation9 + $0x18] sm:$0xf]
        %v532 = vld [vmem:[#allocation9 + $0x1c] sm:$0xf]
        %v533 = vld [vmem:[#allocation9 + $0x20] sm:$0xf]
        %v534 = vld [vmem:[#allocation9 + $0x24] sm:$0xf]
        %v535 = vld [vmem:[#allocation9 + $0x28] sm:$0xf]
        %v536 = vld [vmem:[#allocation9 + $0x2c] sm:$0xf]
        %v537 = vld [vmem:[#allocation9 + $0x30] sm:$0xf]
        %v538 = vld [vmem:[#allocation9 + $0x34] sm:$0xf]
        %v539 = vld [vmem:[#allocation9 + $0x38] sm:$0xf]
        %v540 = vld [vmem:[#allocation9 + $0x3c] sm:$0xf]
        %v557 = vunpack.c.l.b16 %v525
        %v558 = vunpack.c.l.b16 %v526
        %v559 = vunpack.c.l.b16 %v527
        %v560 = vunpack.c.l.b16 %v528
        %v561 = vunpack.c.l.b16 %v529
        %v562 = vunpack.c.l.b16 %v530
        %v563 = vunpack.c.l.b16 %v531
        %v564 = vunpack.c.l.b16 %v532
        %v565 = vunpack.c.l.b16 %v533
        %v566 = vunpack.c.l.b16 %v534
        %v567 = vunpack.c.l.b16 %v535
        %v568 = vunpack.c.l.b16 %v536
        %v569 = vunpack.c.l.b16 %v537
        %v570 = vunpack.c.l.b16 %v538
        %v571 = vunpack.c.l.b16 %v539
        %v572 = vunpack.c.l.b16 %v540
        %v573 = vpack.c.b16 %v558, %v557
        %v574 = vpack.c.b16 %v560, %v559
        %v575 = vpack.c.b16 %v562, %v561
        %v576 = vpack.c.b16 %v564, %v563
        %v577 = vpack.c.b16 %v566, %v565
        %v578 = vpack.c.b16 %v568, %v567
        %v579 = vpack.c.b16 %v570, %v569
        %v580 = vpack.c.b16 %v572, %v571
        %589 = vmatprep.subr.bf16.mxu0 0
        %590 = vmatpush1.bf16.msra.mxu0 %v573
        %591 = vmatprep.subr.bf16.mxu0 0
        %592 = vmatpush1.bf16.msra.mxu0 %v574
        %593 = vmatprep.subr.bf16.mxu0 0
        %594 = vmatpush1.bf16.msra.mxu0 %v575
        %595 = vmatprep.subr.bf16.mxu0 0
        %596 = vmatpush1.bf16.msra.mxu0 %v576
        %597 = vmatprep.subr.bf16.mxu0 0
        %598 = vmatpush1.bf16.msra.mxu0 %v577
        %599 = vmatprep.subr.bf16.mxu0 0
        %600 = vmatpush1.bf16.msra.mxu0 %v578
        %601 = vmatprep.subr.bf16.mxu0 0
        %602 = vmatpush1.bf16.msra.mxu0 %v579
        %603 = vmatprep.subr.bf16.mxu0 0
        %604 = vmatpush1.bf16.msra.mxu0 %v580
        %605 = vmatprep.subr.bf16.mxu0 0
        %606 = vmatpush1.bf16.msra.mxu0 0
        %607 = vmatprep.subr.bf16.mxu0 0
        %608 = vmatpush1.bf16.msra.mxu0 0
        %609 = vmatprep.subr.bf16.mxu0 0
        %610 = vmatpush1.bf16.msra.mxu0 0
        %611 = vmatprep.subr.bf16.mxu0 0
        %612 = vmatpush1.bf16.msra.mxu0 0
        %613 = vmatprep.subr.bf16.mxu0 0
        %614 = vmatpush1.bf16.msra.mxu0 0
        %615 = vmatprep.subr.bf16.mxu0 0
        %616 = vmatpush1.bf16.msra.mxu0 0
        %617 = vmatprep.subr.bf16.mxu0 0
        %618 = vmatpush1.bf16.msra.mxu0 0
        %619 = vmatprep.subr.bf16.mxu0 0
        %620 = vmatpush1.bf16.msra.mxu0 0
        %621 = vmatprep.mubr.bf16.mxu0 0
        %622 = vmatmul.mubr.bf16.gmra.mrb[0].mxu0 %v524
        %v623 = vpop.f32.mrb[0].mxu0
        %v624 = vadd.f32 0.0, %v623
        %v625 = vpop.f32.mrb[0].mxu0
        %v626 = vpop.f32.mrb[0].mxu0
        %v627 = vpop.f32.mrb[0].mxu0
        %628 = vdwg.mxu0
        %v629 = vadd.f32 %v523, %v624
        %630 = vst [vmem:[#allocation3] sm:$0xff] %v629
        // Predicated region
        $region65: #{tpu_custom_call.1} parent=47 // pred_check
          %p631 = pneg %p366
        $region66: #{tpu_custom_call.1} parent=47 // pred_check_branch
          %633 = sbr.rel (%p631) target = $region68
        $region67: #{tpu_custom_call.1} parent=47 // pred_region
          %v634 = vld [vmem:[#allocation3] sm:$0xff]
          %v635 = vld [vmem:[%s6] sm:$0x1]
          %v637 = vlaneseq
          %v638 = vshrl.u32 %v637, 7
          %v639 = vsub.s32 0, %v638
          %v640 = vrot.slane %v635, %v639
          %v642 = vadd.f32 %v634, %v640
          %v643 = vld [vmem:[%s319] sm:$0xff]
          %v644 = vadd.f32 %v642, %v643
          %645 = vst [vmem:[%s360] sm:$0xff] %v644
        $region68: #{tpu_custom_call.1} parent=47 // pred_fallthru
          _
        %s646 = sand.u32 %s212, 1
        %s647 = scalar_lea.sflag [#allocation6], %s646
        %s648 = sand.u32 %s212, 1
        %s649 = smul.addr %s648, 8
        %s650 = scalar_lea.vmem [#allocation10], %s649
        // Predicated region
        $region69: #{tpu_custom_call.1} parent=47 // pred_check
          %p651 = pneg %p222
        $region70: #{tpu_custom_call.1} parent=47 // pred_check_branch
          %653 = sbr.rel (%p651) target = $region72
        $region71: #{tpu_custom_call.1} parent=47 // pred_region
          %s655 = ssub.s32 128, 128
          %656 = vsyncadd %s647, %s655
          %s657 = smul.addr %s29, 128
          %s658 = scalar_lea.hbm %s7, %s657
          %s660 = sshll.u32 %s650, 4
          %s661 = int_to_ptr.vmem [resolvable:$true] %s660
          %663 = dma.vmem_to_hbm [thread:$0]  %s661, 128, %s658, %s647
        $region72: #{tpu_custom_call.1} parent=47 // pred_fallthru
          _
      $region48: #{tpu_custom_call.1} parent=5 // pred_fallthru
        _
      %p664 = scmp.le.s32.totalorder 2, %s20
      // Predicated region
      $region73: #{tpu_custom_call.1} parent=5 // pred_check
        %p665 = pneg %p664
      $region74: #{tpu_custom_call.1} parent=5 // pred_check_branch
        %667 = sbr.rel (%p665) target = $region76
      $region75: #{tpu_custom_call.1} parent=5 // pred_region
        %s668 = ssub.s32 %s20, 2
        // Predicated region
        $region77: #{tpu_custom_call.1} parent=75 // pred_check
          %p669 = pneg %p228
        $region78: #{tpu_custom_call.1} parent=75 // pred_check_branch
          %671 = sbr.rel (%p669) target = $region80
        $region79: #{tpu_custom_call.1} parent=75 // pred_region
          %s672 = sand.u32 %s213, 1
          %s673 = scalar_lea.sflag [#allocation6], %s672
          %s674 = sand.u32 %s213, 1
          %s675 = smul.addr %s674, 8
          %s676 = scalar_lea.vmem [#allocation10], %s675
          %677 = dma.done %s673, 128
        $region80: #{tpu_custom_call.1} parent=75 // pred_fallthru
          _
      $region76: #{tpu_custom_call.1} parent=5 // pred_fallthru
        _
    $region6: #{tpu_custom_call.1} parent=1 // loop_footer
      %s24 = sadd.s32 1, %s20
    $region7: #{tpu_custom_call.1} parent=1 // loop_footer_branch
      %19 = sbr.rel target = $region3
    $region8: #{tpu_custom_call.1} parent=1 // loop_exit
      _
    %678 = vsyncpa [#allocation5], 1
    %s679 = scalar_lea.sflag [#allocation5], 1
    %680 = vsyncpa %s679, 1
    %681 = vsyncpa [#allocation8], 1
    %682 = vsyncpa [#allocation6], 1
    %s683 = scalar_lea.sflag [#allocation6], 1
    %684 = vsyncpa %s683, 1

</llo_original>
